<compile_context>
chip_gen: v7x
topology: tpu7x:2x2x1
jax: 0.10.0
libtpu: 0.0.40
codegen_flags: <defaults>
</compile_context>

<pallas_src>
import jax
import jax.numpy as jnp
from jax.experimental import pallas as pl
from jax.experimental.pallas import tpu as pltpu


def mean_pooling_kernel(h_ref, m_ref, d_ref, out_ref, acc_ref):
    # h_ref:   [bB, tS, H]   hidden-state tile
    # m_ref:   [bB, tS, 1]   f32 mask tile (broadcasts over the H lanes)
    # d_ref:   [bB, 1]       f32 clamped mask counts (precomputed, whole rows)
    # out_ref: [bB, H]       mean embeddings (written on the last S step)
    # acc_ref: [bB, H] f32   running masked sum
    s = pl.program_id(1)

    @pl.when(s == 0)
    def _init():
        acc_ref[...] = jnp.zeros_like(acc_ref)

    # Masked sum on the VPU: elementwise multiply + sublane-sum, exact f32
    # accumulation for both f32 and bf16 inputs.
    masked = h_ref[...].astype(jnp.float32) * m_ref[...]
    acc_ref[...] += jnp.sum(masked, axis=1)

    @pl.when(s == pl.num_programs(1) - 1)
    def _finalize():
        # d_ref already has clamp(min=1e-9) applied; divide exactly once.
        out_ref[...] = (acc_ref[...] / d_ref[...]).astype(out_ref.dtype)


def mean_pooling(last_hidden_state, attention_mask, *, block_b=8, block_s=512):
    """Masked mean pooling over the sequence axis, Pallas TPU kernel."""
    B, S, H = last_hidden_state.shape
    dtype = last_hidden_state.dtype
    itemsize = jnp.dtype(dtype).itemsize

    # Lane-dense hidden dim: pad H up to a multiple of 128 (zero columns do
    # not change the masked sums; sliced back off after the kernel).
    Hp = -(-H // 128) * 128
    if Hp != H:
        last_hidden_state = jnp.pad(
            last_hidden_state, ((0, 0), (0, 0), (0, Hp - H)))

    bB = min(block_b, B)
    tS = min(block_s, S)
    assert B % bB == 0, f"B={B} must be divisible by block_b={bB}"
    assert S % tS == 0, f"S={S} must be divisible by block_s={tS}"

    # Wrapper-side layout + denominator: mask as [B, S, 1] f32; the clamped
    # count is computed once here in f32 (no in-kernel cross-lane reduction,
    # no bf16 integer-precision hazard).
    mask_f = attention_mask.astype(jnp.float32).reshape(B, S, 1)
    denom = jnp.maximum(jnp.sum(mask_f, axis=1), 1e-9)  # [B, 1] f32

    # VMEM budget: h double buffer dominates; size the scoped limit to fit
    # (with headroom) so larger tiles are legal on v5e/v6e/v7x defaults.
    vmem_need = (
        2 * bB * tS * Hp * itemsize     # h double buffer
        + 2 * bB * tS * 4               # mask double buffer
        + 2 * bB * 4                    # denom double buffer
        + 2 * bB * Hp * itemsize        # output double buffer
        + bB * Hp * 4                   # f32 accumulator scratch
    )
    vmem_limit = max(int(vmem_need * 1.5) + (4 << 20), 32 << 20)

    grid = (B // bB, S // tS)
    out = pl.pallas_call(
        mean_pooling_kernel,
        out_shape=jax.ShapeDtypeStruct((B, Hp), dtype),
        grid_spec=pltpu.PrefetchScalarGridSpec(
            num_scalar_prefetch=0,
            grid=grid,
            in_specs=[
                pl.BlockSpec((bB, tS, Hp), lambda b, s: (b, s, 0)),
                pl.BlockSpec((bB, tS, 1), lambda b, s: (b, s, 0)),
                pl.BlockSpec((bB, 1), lambda b, s: (b, 0)),
            ],
            out_specs=pl.BlockSpec((bB, Hp), lambda b, s: (b, 0)),
            scratch_shapes=[
                pltpu.VMEM((bB, Hp), jnp.float32),   # masked-sum accumulator
            ],
        ),
        compiler_params=pltpu.CompilerParams(
            dimension_semantics=("parallel", "arbitrary"),
            vmem_limit_bytes=vmem_limit,
        ),
        cost_estimate=pl.CostEstimate(
            flops=2 * B * S * Hp,
            transcendentals=0,
            bytes_accessed=B * S * Hp * itemsize + B * S * 4 + B * Hp * itemsize,
        ),
    )(last_hidden_state, mask_f, denom)

    return out[:, :H] if Hp != H else out


def reference_mean_pooling(last_hidden_state, attention_mask):
    """Pure-JAX reference mirroring the PyTorch MeanPooling semantics."""
    m = attention_mask.astype(jnp.float32)[:, :, None]
    sum_emb = jnp.sum(last_hidden_state * m, axis=1)
    sum_mask = jnp.maximum(jnp.sum(m, axis=1), 1e-9)
    return sum_emb / sum_mask


if __name__ == "__main__":
    # Small but grid-exercising shapes: batch=16, seq=256, hidden=64
    # -> grid = (2, 1) with (bB=8, tS=256) blocks, H padded 64 -> 128.
    B, S, H = 16, 256, 64

    key = jax.random.PRNGKey(0)
    k_h, k_len = jax.random.split(key)

    last_hidden_state = jax.random.normal(k_h, (B, S, H), dtype=jnp.float32)

    # Variable-length attention masks, including a fully-padded row
    # (exercises clamp(min=1e-9)) and a full-length row.
    lengths = jax.random.randint(k_len, (B,), 0, S + 1, dtype=jnp.int32)
    lengths = lengths.at[0].set(0)
    lengths = lengths.at[1].set(S)
    attention_mask = (jnp.arange(S)[None, :] < lengths[:, None]).astype(jnp.float32)

    out = mean_pooling(last_hidden_state, attention_mask)
    out = jax.block_until_ready(out)

    ref = reference_mean_pooling(last_hidden_state, attention_mask)
    assert out.shape == (B, H)
    max_err = float(jnp.max(jnp.abs(out - ref)))
    assert jnp.allclose(out, ref, atol=1e-5, rtol=1e-5), max_err

    print("KERNEL_OK")
</pallas_src>

<mosaic_0001>
module attributes {stable_mosaic.version = 11 : i64} {
  func.func @mean_pooling_kernel(%arg0: i32, %arg1: i32, %arg2: memref<8x256x128xf32, #tpu.memory_space<vmem>>, %arg3: memref<8x256x1xf32, #tpu.memory_space<vmem>>, %arg4: memref<8x1xf32, #tpu.memory_space<vmem>>, %arg5: memref<8x128xf32, #tpu.memory_space<vmem>>, %arg6: memref<8x128xf32, #tpu.memory_space<vmem>>) attributes {dimension_semantics = [#tpu.dimension_semantics<parallel>, #tpu.dimension_semantics<arbitrary>], iteration_bounds = array<i64: 2, 1>, scalar_prefetch = 0 : i64, scratch_operands = 1 : i64, tpu.core_type = #tpu.core_type<tc>, window_params = [{transform_indices = @transform_0, window_bounds = array<i64: 8, 256, 128>}, {transform_indices = @transform_1, window_bounds = array<i64: 8, 256, 1>}, {transform_indices = @transform_2, window_bounds = array<i64: 8, 1>}, {transform_indices = @transform_3, window_bounds = array<i64: 8, 128>}]} {
    %c0_i32 = arith.constant 0 : i32
    %0 = arith.cmpi eq, %arg1, %c0_i32 : i32
    %1 = arith.extui %0 : i1 to i32
    %c0_i32_0 = arith.constant 0 : i32
    %2 = arith.cmpi ne, %1, %c0_i32_0 : i32
    scf.if %2 {
      %cst_12 = arith.constant 0.000000e+00 : f32
      %14 = vector.broadcast %cst_12 : f32 to vector<8x128xf32>
      %c0_13 = arith.constant 0 : index
      %c0_14 = arith.constant 0 : index
      %15 = vector.load %arg6[%c0_13, %c0_14] : memref<8x128xf32, #tpu.memory_space<vmem>>, vector<8x128xf32>
      tpu.vector_store %arg6[%c0_13, %c0_14], %14 {strides = array<i32>} : memref<8x128xf32, #tpu.memory_space<vmem>>, vector<8x128xf32>,
    } else {
    }
    %c0 = arith.constant 0 : index
    %c0_1 = arith.constant 0 : index
    %c0_2 = arith.constant 0 : index
    %3 = vector.load %arg2[%c0, %c0_1, %c0_2] : memref<8x256x128xf32, #tpu.memory_space<vmem>>, vector<8x256x128xf32>
    %c0_3 = arith.constant 0 : index
    %c0_4 = arith.constant 0 : index
    %c0_5 = arith.constant 0 : index
    %4 = vector.load %arg3[%c0_3, %c0_4, %c0_5] : memref<8x256x1xf32, #tpu.memory_space<vmem>>, vector<8x256x1xf32>
    %5 = vector.broadcast %4 : vector<8x256x1xf32> to vector<8x256x128xf32>
    %6 = arith.mulf %3, %5 : vector<8x256x128xf32>
    %c0_6 = arith.constant 0 : index
    %c0_7 = arith.constant 0 : index
    %7 = vector.load %arg6[%c0_6, %c0_7] : memref<8x128xf32, #tpu.memory_space<vmem>>, vector<8x128xf32>
    %cst = arith.constant dense<0.000000e+00> : vector<8x128xf32>
    %8 = vector.multi_reduction <add>, %6, %cst [1] : vector<8x256x128xf32> to vector<8x128xf32>
    %9 = arith.addf %7, %8 : vector<8x128xf32>
    %c0_8 = arith.constant 0 : index
    %c0_9 = arith.constant 0 : index
    %10 = vector.load %arg6[%c0_8, %c0_9] : memref<8x128xf32, #tpu.memory_space<vmem>>, vector<8x128xf32>
    tpu.vector_store %arg6[%c0_8, %c0_9], %9 {strides = array<i32>} : memref<8x128xf32, #tpu.memory_space<vmem>>, vector<8x128xf32>,
    %c0_i32_10 = arith.constant 0 : i32
    %11 = arith.cmpi eq, %arg1, %c0_i32_10 : i32
    %12 = arith.extui %11 : i1 to i32
    %c0_i32_11 = arith.constant 0 : i32
    %13 = arith.cmpi ne, %12, %c0_i32_11 : i32
    scf.if %13 {
      %c0_12 = arith.constant 0 : index
      %c0_13 = arith.constant 0 : index
      %14 = vector.load %arg6[%c0_12, %c0_13] : memref<8x128xf32, #tpu.memory_space<vmem>>, vector<8x128xf32>
      %c0_14 = arith.constant 0 : index
      %c0_15 = arith.constant 0 : index
      %15 = vector.load %arg4[%c0_14, %c0_15] : memref<8x1xf32, #tpu.memory_space<vmem>>, vector<8x1xf32>
      %16 = vector.broadcast %15 : vector<8x1xf32> to vector<8x128xf32>
      %17 = arith.divf %14, %16 : vector<8x128xf32>
      %c0_16 = arith.constant 0 : index
      %c0_17 = arith.constant 0 : index
      %18 = vector.load %arg5[%c0_16, %c0_17] : memref<8x128xf32, #tpu.memory_space<vmem>>, vector<8x128xf32>
      tpu.vector_store %arg5[%c0_16, %c0_17], %17 {strides = array<i32>} : memref<8x128xf32, #tpu.memory_space<vmem>>, vector<8x128xf32>,
    } else {
    }
    return
  }
  func.func @transform_0(%arg0: i32, %arg1: i32) -> (i32, i32, i32) {
    %c0_i32 = arith.constant 0 : i32
    %c0_i32_0 = arith.constant 0 : i32
    return %arg0, %arg1, %c0_i32 : i32, i32, i32
  }
  func.func @transform_1(%arg0: i32, %arg1: i32) -> (i32, i32, i32) {
    %c0_i32 = arith.constant 0 : i32
    %c0_i32_0 = arith.constant 0 : i32
    return %arg0, %arg1, %c0_i32 : i32, i32, i32
  }
  func.func @transform_2(%arg0: i32, %arg1: i32) -> (i32, i32) {
    %c0_i32 = arith.constant 0 : i32
    %c0_i32_0 = arith.constant 0 : i32
    return %arg0, %c0_i32 : i32, i32
  }
  func.func @transform_3(%arg0: i32, %arg1: i32) -> (i32, i32) {
    %c0_i32 = arith.constant 0 : i32
    %c0_i32_0 = arith.constant 0 : i32
    return %arg0, %c0_i32 : i32, i32
  }
}

</mosaic_0001>

<llo_original>
// kernel: tpu_custom_call.1
$region0: #{tpu_custom_call.1}
  #allocation0 [shape = 'u32[]', space=smem, size = 0x4, offset = 0x4, fixed_abs, tag = 'smem constant byte address 0x4 - core index']
  #allocation1 [shape = 'u32[144,128]{1,0:T(1,128)}', space=vmem, size = 0x12000, scoped, tag = 'internal scratch']
  #allocation2 [shape = 'f32[8,128]{1,0:T(8,128)}', space=vmem, size = 0x1000, scoped, tag = 'scratch operand']
  %s0 = inlined_call_operand.vmem [shape: f32[16,256,128], index: 0, kind: input, shape index: {}]
  %s1 = inlined_call_operand.vmem [shape: f32[16,256,1], index: 1, kind: input, shape index: {}]
  %s2 = inlined_call_operand.vmem [shape: f32[16,1], index: 2, kind: input, shape index: {}]
  %s3 = inlined_call_operand.hbm [shape: f32[16,128], index: 3, kind: output, shape index: {}]
  %s4 = sld [smem:[#allocation0]]
  $region53: #{tpu_custom_call.1} parent=0
    _
  %s6 = ssub.s32 1, %s4
  %s7 = scalar_select 0, %s6, %s4
  $region1: #{tpu_custom_call.1} parent=0
    #allocation3 [shape = 'u8[8192]{0}', space=vmem, size = 0x2000, scoped, tag = 'output window, operand 0']
    #allocation4 [shape = 's32[2]{0}', space=sflag, size = 0x8, scoped, tag = 'scoped memory for tpu_custom_call.1']
    %8 = vsyncpa [#allocation4], 0
    %s9 = scalar_lea.sflag [#allocation4], 1
    %10 = vsyncpa %s9, 0
    loop: start=0, step=1, limit=4
    $region2: #{tpu_custom_call.1} parent=1 // loop_pre_header
      _
    $region3: #{tpu_custom_call.1} parent=1 // loop_header
      %s12 = sphi 0, %s16
      %p13 = scmp.ge.s32.totalorder %s12, 4
      %s19 = sphi 0, %s31
      %s20 = sphi 0, %s27
      %s21 = sphi 0, %s19
      %s22 = sphi 0, %s20
      %s23 = sphi 0, %s21
      %s24 = sphi 0, %s22
      %s36 = sphi 0, %s38
      %s39 = sphi 0, %s36
      %s40 = sphi 0, %s39
      %s56 = sphi 0, %s40
      %s64 = sphi 0, %s66
      %s67 = sphi 0, %s64
      %s68 = sphi 0, %s67
      %s84 = sphi 0, %s68
      %s90 = sphi 0, %s92
      %s93 = sphi 0, %s90
      %s94 = sphi 0, %s93
      %s110 = sphi 0, %s94
      %s116 = sphi 0, %s118
      %s119 = sphi 0, %s116
      %s120 = sphi 0, %s119
      %s136 = sphi 0, %s120
    $region4: #{tpu_custom_call.1} parent=1 // loop_header_branch
      %15 = sbr.rel (%p13) target = $region8
    $region5: #{tpu_custom_call.1} parent=1 // loop_body
      %s17 = ssub.s32 %s12, 1
      %s18 = ssub.s32 %s12, 2
      %s25 = sadd.s32 1, %s20
      %p26 = scmp.ge.s32.totalorder %s25, 1
      %s27 = scalar_select %p26, 0, %s25
      %s28 = sadd.s32 1, %s19
      %s29 = scalar_select %p26, %s28, %s19
      %p30 = scmp.ge.s32.totalorder %s29, 2
      %s31 = scalar_select %p30, 0, %s29
      %s32 = ssub.s32 %s19, %s31
      %s33 = ssub.s32 %s20, %s27
      %s34 = sor.u32 %s32, %s33
      %p35 = scmp.eq.s32.totalorder %s34, 0
      %s37 = sadd.s32 %s36, 1
      %s38 = scalar_select %p35, %s36, %s37
      %p41 = pneg %p35
      %p42 = scmp.eq.s32.totalorder %s12, 1
      %p43 = por %p41, %p42
      %p44 = scmp.ne.s32.totalorder %s36, %s39
      %p45 = scmp.eq.s32.totalorder %s12, 0
      %p46 = por %p44, %p45
      %p47 = scmp.ne.s32.totalorder %s36, %s39
      %p48 = scmp.eq.s32.totalorder %s17, 1
      %p49 = por %p47, %p48
      %p50 = scmp.ne.s32.totalorder %s39, %s40
      %p51 = scmp.eq.s32.totalorder %s17, 0
      %p52 = por %p50, %p51
      %p53 = scmp.ne.s32.totalorder %s39, %s40
      %p54 = scmp.eq.s32.totalorder %s18, 1
      %p55 = por %p53, %p54
      %p57 = scmp.ne.s32.totalorder %s40, %s56
      %p58 = scmp.eq.s32.totalorder %s18, 0
      %p59 = por %p57, %p58
      %s60 = ssub.s32 %s19, %s31
      %s61 = ssub.s32 %s20, %s27
      %s62 = sor.u32 %s60, %s61
      %p63 = scmp.eq.s32.totalorder %s62, 0
      %s65 = sadd.s32 %s64, 1
      %s66 = scalar_select %p63, %s64, %s65
      %p69 = pneg %p63
      %p70 = scmp.eq.s32.totalorder %s12, 1
      %p71 = por %p69, %p70
      %p72 = scmp.ne.s32.totalorder %s64, %s67
      %p73 = scmp.eq.s32.totalorder %s12, 0
      %p74 = por %p72, %p73
      %p75 = scmp.ne.s32.totalorder %s64, %s67
      %p76 = scmp.eq.s32.totalorder %s17, 1
      %p77 = por %p75, %p76
      %p78 = scmp.ne.s32.totalorder %s67, %s68
      %p79 = scmp.eq.s32.totalorder %s17, 0
      %p80 = por %p78, %p79
      %p81 = scmp.ne.s32.totalorder %s67, %s68
      %p82 = scmp.eq.s32.totalorder %s18, 1
      %p83 = por %p81, %p82
      %p85 = scmp.ne.s32.totalorder %s68, %s84
      %p86 = scmp.eq.s32.totalorder %s18, 0
      %p87 = por %p85, %p86
      %s88 = ssub.s32 %s19, %s31
      %p89 = scmp.eq.s32.totalorder %s88, 0
      %s91 = sadd.s32 %s90, 1
      %s92 = scalar_select %p89, %s90, %s91
      %p95 = pneg %p89
      %p96 = scmp.eq.s32.totalorder %s12, 1
      %p97 = por %p95, %p96
      %p98 = scmp.ne.s32.totalorder %s90, %s93
      %p99 = scmp.eq.s32.totalorder %s12, 0
      %p100 = por %p98, %p99
      %p101 = scmp.ne.s32.totalorder %s90, %s93
      %p102 = scmp.eq.s32.totalorder %s17, 1
      %p103 = por %p101, %p102
      %p104 = scmp.ne.s32.totalorder %s93, %s94
      %p105 = scmp.eq.s32.totalorder %s17, 0
      %p106 = por %p104, %p105
      %p107 = scmp.ne.s32.totalorder %s93, %s94
      %p108 = scmp.eq.s32.totalorder %s18, 1
      %p109 = por %p107, %p108
      %p111 = scmp.ne.s32.totalorder %s94, %s110
      %p112 = scmp.eq.s32.totalorder %s18, 0
      %p113 = por %p111, %p112
      %s114 = ssub.s32 %s19, %s31
      %p115 = scmp.eq.s32.totalorder %s114, 0
      %s117 = sadd.s32 %s116, 1
      %s118 = scalar_select %p115, %s116, %s117
      %p121 = pneg %p115
      %p122 = scmp.eq.s32.totalorder %s12, 1
      %p123 = por %p121, %p122
      %p124 = scmp.ne.s32.totalorder %s116, %s119
      %p125 = scmp.eq.s32.totalorder %s12, 0
      %p126 = por %p124, %p125
      %p127 = scmp.ne.s32.totalorder %s116, %s119
      %p128 = scmp.eq.s32.totalorder %s17, 1
      %p129 = por %p127, %p128
      %p130 = scmp.ne.s32.totalorder %s119, %s120
      %p131 = scmp.eq.s32.totalorder %s17, 0
      %p132 = por %p130, %p131
      %p133 = scmp.ne.s32.totalorder %s119, %s120
      %p134 = scmp.eq.s32.totalorder %s18, 1
      %p135 = por %p133, %p134
      %p137 = scmp.ne.s32.totalorder %s120, %s136
      %p138 = scmp.eq.s32.totalorder %s18, 0
      %p139 = por %p137, %p138
      %p140 = scmp.le.s32.totalorder 1, %s12
      %p141 = scmp.lt.s32.totalorder %s12, 3
      %p142 = pnand %p140, %p141
      %p143 = pneg %p142
      // Predicated region
      $region9: #{tpu_custom_call.1} parent=5 // pred_check
        _
      $region10: #{tpu_custom_call.1} parent=5 // pred_check_branch
        %145 = sbr.rel (%p142) target = $region12
      $region11: #{tpu_custom_call.1} parent=5 // pred_region
        %s146 = ssub.s32 %s12, 1
      $region12: #{tpu_custom_call.1} parent=5 // pred_fallthru
        _
      %p147 = scmp.lt.s32.totalorder %s12, 2
      // Predicated region
      $region13: #{tpu_custom_call.1} parent=5 // pred_check
        %p148 = pneg %p147
      $region14: #{tpu_custom_call.1} parent=5 // pred_check_branch
        %150 = sbr.rel (%p148) target = $region16
      $region15: #{tpu_custom_call.1} parent=5 // pred_region
        // Predicated region
        $region17: #{tpu_custom_call.1} parent=15 // pred_check
          %p151 = pneg %p46
        $region18: #{tpu_custom_call.1} parent=15 // pred_check_branch
          %153 = sbr.rel (%p151) target = $region20
        $region19: #{tpu_custom_call.1} parent=15 // pred_region
          %s154 = smul.u32 8, %s19
          %s155 = smul.u32 32, %s20
          %p156 = scmp.lt.s32.totalorder %s154, 15
          %s157 = scalar_select %p156, %s154, 15
          %p158 = scmp.lt.s32.totalorder %s155, 31
          %s159 = scalar_select %p158, %s155, 31
          %s160 = smul.addr %s157, 32
          %s161 = sadd.s32 %s159, %s160
          %s162 = smul.addr %s161, 8
          %s163 = scalar_lea.vmem %s0, %s162
          %s164 = smul.u32 8, %s19
          %s165 = smul.u32 32, %s20
        $region20: #{tpu_custom_call.1} parent=15 // pred_fallthru
          _
        // Predicated region
        $region21: #{tpu_custom_call.1} parent=15 // pred_check
          %p166 = pneg %p74
        $region22: #{tpu_custom_call.1} parent=15 // pred_check_branch
          %168 = sbr.rel (%p166) target = $region24
        $region23: #{tpu_custom_call.1} parent=15 // pred_region
          %s169 = smul.u32 8, %s19
          %s170 = smul.u32 32, %s20
          %p171 = scmp.lt.s32.totalorder %s169, 15
          %s172 = scalar_select %p171, %s169, 15
          %p173 = scmp.lt.s32.totalorder %s170, 31
          %s174 = scalar_select %p173, %s170, 31
          %s175 = smul.addr %s172, 32
          %s176 = sadd.s32 %s174, %s175
          %s177 = smul.addr %s176, 8
          %s178 = scalar_lea.vmem %s1, %s177
          %s179 = smul.u32 8, %s19
          %s180 = smul.u32 32, %s20
        $region24: #{tpu_custom_call.1} parent=15 // pred_fallthru
          _
        // Predicated region
        $region25: #{tpu_custom_call.1} parent=15 // pred_check
          %p181 = pneg %p100
        $region26: #{tpu_custom_call.1} parent=15 // pred_check_branch
          %183 = sbr.rel (%p181) target = $region28
        $region27: #{tpu_custom_call.1} parent=15 // pred_region
          %p184 = scmp.lt.s32.totalorder %s19, 1
          %s185 = scalar_select %p184, %s19, 1
          %s186 = smul.addr %s185, 8
          %s187 = scalar_lea.vmem %s2, %s186
        $region28: #{tpu_custom_call.1} parent=15 // pred_fallthru
          _
      $region16: #{tpu_custom_call.1} parent=5 // pred_fallthru
        _
      %p188 = scmp.le.s32.totalorder 1, %s12
      %p189 = scmp.lt.s32.totalorder %s12, 3
      %p190 = pnand %p188, %p189
      %p191 = pneg %p190
      // Predicated region
      $region29: #{tpu_custom_call.1} parent=5 // pred_check
        _
      $region30: #{tpu_custom_call.1} parent=5 // pred_check_branch
        %193 = sbr.rel (%p190) target = $region32
      $region31: #{tpu_custom_call.1} parent=5 // pred_region
        %s194 = ssub.s32 %s12, 1
        %s195 = smul.u32 8, %s21
        %s196 = smul.u32 32, %s22
        %p197 = scmp.lt.s32.totalorder %s195, 15
        %s198 = scalar_select %p197, %s195, 15
        %p199 = scmp.lt.s32.totalorder %s196, 31
        %s200 = scalar_select %p199, %s196, 31
        %s201 = smul.addr %s198, 32
        %s202 = sadd.s32 %s200, %s201
        %s203 = smul.addr %s202, 8
        %s204 = scalar_lea.vmem %s0, %s203
        %p205 = pneg %p52
        %p206 = pneg %p49
        %s207 = smul.u32 8, %s21
        %s208 = smul.u32 32, %s22
        %p209 = scmp.lt.s32.totalorder %s207, 15
        %s210 = scalar_select %p209, %s207, 15
        %p211 = scmp.lt.s32.totalorder %s208, 31
        %s212 = scalar_select %p211, %s208, 31
        %s213 = smul.addr %s210, 32
        %s214 = sadd.s32 %s212, %s213
        %s215 = smul.addr %s214, 8
        %s216 = scalar_lea.vmem %s1, %s215
        %p217 = pneg %p80
        %p218 = pneg %p77
        %p219 = scmp.lt.s32.totalorder %s21, 1
        %s220 = scalar_select %p219, %s21, 1
        %s221 = smul.addr %s220, 8
        %s222 = scalar_lea.vmem %s2, %s221
        %p223 = pneg %p106
        %p224 = pneg %p103
        %p225 = pneg %p132
        %p226 = pneg %p129
        %s227 = sand.u32 %s119, 1
        %s228 = scalar_lea.sflag [#allocation4], %s227
        %s229 = sand.u32 %s119, 1
        %s230 = smul.addr %s229, 8
        %s231 = scalar_lea.vmem [#allocation3], %s230
        %s232 = smul.u32 8, %s21
        %s233 = smul.u32 32, %s22
        %p234 = scmp.lt.s32.totalorder %s232, 15
        %s235 = scalar_select %p234, %s232, 15
        %p236 = scmp.lt.s32.totalorder %s233, 31
        %s237 = scalar_select %p236, %s233, 31
        %s238 = smul.addr %s235, 32
        %s239 = sadd.s32 %s237, %s238
        %s240 = smul.addr %s239, 8
        %s241 = scalar_lea.vmem %s0, %s240
        %s242 = smul.u32 8, %s21
        %s243 = smul.u32 32, %s22
        %s244 = smul.u32 8, %s21
        %s245 = smul.u32 32, %s22
        %p246 = scmp.lt.s32.totalorder %s244, 15
        %s247 = scalar_select %p246, %s244, 15
        %p248 = scmp.lt.s32.totalorder %s245, 31
        %s249 = scalar_select %p248, %s245, 31
        %s250 = smul.addr %s247, 32
        %s251 = sadd.s32 %s249, %s250
        %s252 = smul.addr %s251, 8
        %s253 = scalar_lea.vmem %s1, %s252
        %s254 = smul.u32 8, %s21
        %s255 = smul.u32 32, %s22
        %p256 = scmp.lt.s32.totalorder %s21, 1
        %s257 = scalar_select %p256, %s21, 1
        %s258 = smul.addr %s257, 8
        %s259 = scalar_lea.vmem %s2, %s258
        %p260 = scmp.eq.s32.totalorder %s22, 0
        // Predicated region
        $region33: #{tpu_custom_call.1} parent=31 // pred_check
          %p261 = pneg %p260
        $region34: #{tpu_custom_call.1} parent=31 // pred_check_branch
          %263 = sbr.rel (%p261) target = $region36
        $region35: #{tpu_custom_call.1} parent=31 // pred_region
          %264 = vst [vmem:[#allocation2] sm:$0xff] 0.0
        $region36: #{tpu_custom_call.1} parent=31 // pred_fallthru
          _
        %v265 = vld [vmem:[%s241] sm:$0xff]
        %v266 = vld [vmem:[%s241 + $0x8] sm:$0xff]
        %v267 = vld [vmem:[%s241 + $0x10] sm:$0xff]
        %v268 = vld [vmem:[%s241 + $0x18] sm:$0xff]
        %v269 = vld [vmem:[%s241 + $0x20] sm:$0xff]
        %v270 = vld [vmem:[%s241 + $0x28] sm:$0xff]
        %v271 = vld [vmem:[%s241 + $0x30] sm:$0xff]
        %v272 = vld [vmem:[%s241 + $0x38] sm:$0xff]
        %v273 = vld [vmem:[%s241 + $0x40] sm:$0xff]
        %v274 = vld [vmem:[%s241 + $0x48] sm:$0xff]
        %v275 = vld [vmem:[%s241 + $0x50] sm:$0xff]
        %v276 = vld [vmem:[%s241 + $0x58] sm:$0xff]
        %v277 = vld [vmem:[%s241 + $0x60] sm:$0xff]
        %v278 = vld [vmem:[%s241 + $0x68] sm:$0xff]
        %v279 = vld [vmem:[%s241 + $0x70] sm:$0xff]
        %v280 = vld [vmem:[%s241 + $0x78] sm:$0xff]
        %v281 = vld [vmem:[%s241 + $0x80] sm:$0xff]
        %v282 = vld [vmem:[%s241 + $0x88] sm:$0xff]
        %v283 = vld [vmem:[%s241 + $0x90] sm:$0xff]
        %v284 = vld [vmem:[%s241 + $0x98] sm:$0xff]
        %v285 = vld [vmem:[%s241 + $0xa0] sm:$0xff]
        %v286 = vld [vmem:[%s241 + $0xa8] sm:$0xff]
        %v287 = vld [vmem:[%s241 + $0xb0] sm:$0xff]
        %v288 = vld [vmem:[%s241 + $0xb8] sm:$0xff]
        %v289 = vld [vmem:[%s241 + $0xc0] sm:$0xff]
        %v290 = vld [vmem:[%s241 + $0xc8] sm:$0xff]
        %v291 = vld [vmem:[%s241 + $0xd0] sm:$0xff]
        %v292 = vld [vmem:[%s241 + $0xd8] sm:$0xff]
        %v293 = vld [vmem:[%s241 + $0xe0] sm:$0xff]
        %v294 = vld [vmem:[%s241 + $0xe8] sm:$0xff]
        %v295 = vld [vmem:[%s241 + $0xf0] sm:$0xff]
        %v296 = vld [vmem:[%s241 + $0xf8] sm:$0xff]
        %v297 = vld [vmem:[%s241 + $0x100] sm:$0xff]
        %v298 = vld [vmem:[%s241 + $0x108] sm:$0xff]
        %v299 = vld [vmem:[%s241 + $0x110] sm:$0xff]
        %v300 = vld [vmem:[%s241 + $0x118] sm:$0xff]
        %v301 = vld [vmem:[%s241 + $0x120] sm:$0xff]
        %v302 = vld [vmem:[%s241 + $0x128] sm:$0xff]
        %v303 = vld [vmem:[%s241 + $0x130] sm:$0xff]
        %v304 = vld [vmem:[%s241 + $0x138] sm:$0xff]
        %v305 = vld [vmem:[%s241 + $0x140] sm:$0xff]
        %v306 = vld [vmem:[%s241 + $0x148] sm:$0xff]
        %v307 = vld [vmem:[%s241 + $0x150] sm:$0xff]
        %v308 = vld [vmem:[%s241 + $0x158] sm:$0xff]
        %v309 = vld [vmem:[%s241 + $0x160] sm:$0xff]
        %v310 = vld [vmem:[%s241 + $0x168] sm:$0xff]
        %v311 = vld [vmem:[%s241 + $0x170] sm:$0xff]
        %v312 = vld [vmem:[%s241 + $0x178] sm:$0xff]
        %v313 = vld [vmem:[%s241 + $0x180] sm:$0xff]
        %v314 = vld [vmem:[%s241 + $0x188] sm:$0xff]
        %v315 = vld [vmem:[%s241 + $0x190] sm:$0xff]
        %v316 = vld [vmem:[%s241 + $0x198] sm:$0xff]
        %v317 = vld [vmem:[%s241 + $0x1a0] sm:$0xff]
        %v318 = vld [vmem:[%s241 + $0x1a8] sm:$0xff]
        %v319 = vld [vmem:[%s241 + $0x1b0] sm:$0xff]
        %v320 = vld [vmem:[%s241 + $0x1b8] sm:$0xff]
        %v321 = vld [vmem:[%s241 + $0x1c0] sm:$0xff]
        %v322 = vld [vmem:[%s241 + $0x1c8] sm:$0xff]
        %v323 = vld [vmem:[%s241 + $0x1d0] sm:$0xff]
        %v324 = vld [vmem:[%s241 + $0x1d8] sm:$0xff]
        %v325 = vld [vmem:[%s241 + $0x1e0] sm:$0xff]
        %v326 = vld [vmem:[%s241 + $0x1e8] sm:$0xff]
        %v327 = vld [vmem:[%s241 + $0x1f0] sm:$0xff]
        %v328 = vld [vmem:[%s241 + $0x1f8] sm:$0xff]
        %v329 = vld [vmem:[%s241 + $0x200] sm:$0xff]
        %v330 = vld [vmem:[%s241 + $0x208] sm:$0xff]
        %v331 = vld [vmem:[%s241 + $0x210] sm:$0xff]
        %v332 = vld [vmem:[%s241 + $0x218] sm:$0xff]
        %v333 = vld [vmem:[%s241 + $0x220] sm:$0xff]
        %v334 = vld [vmem:[%s241 + $0x228] sm:$0xff]
        %v335 = vld [vmem:[%s241 + $0x230] sm:$0xff]
        %v336 = vld [vmem:[%s241 + $0x238] sm:$0xff]
        %v337 = vld [vmem:[%s241 + $0x240] sm:$0xff]
        %v338 = vld [vmem:[%s241 + $0x248] sm:$0xff]
        %v339 = vld [vmem:[%s241 + $0x250] sm:$0xff]
        %v340 = vld [vmem:[%s241 + $0x258] sm:$0xff]
        %v341 = vld [vmem:[%s241 + $0x260] sm:$0xff]
        %v342 = vld [vmem:[%s241 + $0x268] sm:$0xff]
        %v343 = vld [vmem:[%s241 + $0x270] sm:$0xff]
        %v344 = vld [vmem:[%s241 + $0x278] sm:$0xff]
        %v345 = vld [vmem:[%s241 + $0x280] sm:$0xff]
        %v346 = vld [vmem:[%s241 + $0x288] sm:$0xff]
        %v347 = vld [vmem:[%s241 + $0x290] sm:$0xff]
        %v348 = vld [vmem:[%s241 + $0x298] sm:$0xff]
        %v349 = vld [vmem:[%s241 + $0x2a0] sm:$0xff]
        %v350 = vld [vmem:[%s241 + $0x2a8] sm:$0xff]
        %v351 = vld [vmem:[%s241 + $0x2b0] sm:$0xff]
        %v352 = vld [vmem:[%s241 + $0x2b8] sm:$0xff]
        %v353 = vld [vmem:[%s241 + $0x2c0] sm:$0xff]
        %v354 = vld [vmem:[%s241 + $0x2c8] sm:$0xff]
        %v355 = vld [vmem:[%s241 + $0x2d0] sm:$0xff]
        %v356 = vld [vmem:[%s241 + $0x2d8] sm:$0xff]
        %v357 = vld [vmem:[%s241 + $0x2e0] sm:$0xff]
        %v358 = vld [vmem:[%s241 + $0x2e8] sm:$0xff]
        %v359 = vld [vmem:[%s241 + $0x2f0] sm:$0xff]
        %v360 = vld [vmem:[%s241 + $0x2f8] sm:$0xff]
        %v361 = vld [vmem:[%s241 + $0x300] sm:$0xff]
        %v362 = vld [vmem:[%s241 + $0x308] sm:$0xff]
        %v363 = vld [vmem:[%s241 + $0x310] sm:$0xff]
        %v364 = vld [vmem:[%s241 + $0x318] sm:$0xff]
        %v365 = vld [vmem:[%s241 + $0x320] sm:$0xff]
        %v366 = vld [vmem:[%s241 + $0x328] sm:$0xff]
        %v367 = vld [vmem:[%s241 + $0x330] sm:$0xff]
        %v368 = vld [vmem:[%s241 + $0x338] sm:$0xff]
        %v369 = vld [vmem:[%s241 + $0x340] sm:$0xff]
        %v370 = vld [vmem:[%s241 + $0x348] sm:$0xff]
        %v371 = vld [vmem:[%s241 + $0x350] sm:$0xff]
        %v372 = vld [vmem:[%s241 + $0x358] sm:$0xff]
        %v373 = vld [vmem:[%s241 + $0x360] sm:$0xff]
        %v374 = vld [vmem:[%s241 + $0x368] sm:$0xff]
        %v375 = vld [vmem:[%s241 + $0x370] sm:$0xff]
        %v376 = vld [vmem:[%s241 + $0x378] sm:$0xff]
        %v377 = vld [vmem:[%s241 + $0x380] sm:$0xff]
        %v378 = vld [vmem:[%s241 + $0x388] sm:$0xff]
        %v379 = vld [vmem:[%s241 + $0x390] sm:$0xff]
        %v380 = vld [vmem:[%s241 + $0x398] sm:$0xff]
        %v381 = vld [vmem:[%s241 + $0x3a0] sm:$0xff]
        %v382 = vld [vmem:[%s241 + $0x3a8] sm:$0xff]
        %v383 = vld [vmem:[%s241 + $0x3b0] sm:$0xff]
        %v384 = vld [vmem:[%s241 + $0x3b8] sm:$0xff]
        %v385 = vld [vmem:[%s241 + $0x3c0] sm:$0xff]
        %v386 = vld [vmem:[%s241 + $0x3c8] sm:$0xff]
        %v387 = vld [vmem:[%s241 + $0x3d0] sm:$0xff]
        %v388 = vld [vmem:[%s241 + $0x3d8] sm:$0xff]
        %v389 = vld [vmem:[%s241 + $0x3e0] sm:$0xff]
        %v390 = vld [vmem:[%s241 + $0x3e8] sm:$0xff]
        %v391 = vld [vmem:[%s241 + $0x3f0] sm:$0xff]
        %v392 = vld [vmem:[%s241 + $0x3f8] sm:$0xff]
        %v393 = vld [vmem:[%s241 + $0x400] sm:$0xff]
        %v394 = vld [vmem:[%s241 + $0x408] sm:$0xff]
        %v395 = vld [vmem:[%s241 + $0x410] sm:$0xff]
        %v396 = vld [vmem:[%s241 + $0x418] sm:$0xff]
        %v397 = vld [vmem:[%s241 + $0x420] sm:$0xff]
        %v398 = vld [vmem:[%s241 + $0x428] sm:$0xff]
        %v399 = vld [vmem:[%s241 + $0x430] sm:$0xff]
        %v400 = vld [vmem:[%s241 + $0x438] sm:$0xff]
        %v401 = vld [vmem:[%s241 + $0x440] sm:$0xff]
        %v402 = vld [vmem:[%s241 + $0x448] sm:$0xff]
        %v403 = vld [vmem:[%s241 + $0x450] sm:$0xff]
        %v404 = vld [vmem:[%s241 + $0x458] sm:$0xff]
        %v405 = vld [vmem:[%s241 + $0x460] sm:$0xff]
        %v406 = vld [vmem:[%s241 + $0x468] sm:$0xff]
        %v407 = vld [vmem:[%s241 + $0x470] sm:$0xff]
        %v408 = vld [vmem:[%s241 + $0x478] sm:$0xff]
        %v409 = vld [vmem:[%s241 + $0x480] sm:$0xff]
        %v410 = vld [vmem:[%s241 + $0x488] sm:$0xff]
        %v411 = vld [vmem:[%s241 + $0x490] sm:$0xff]
        %v412 = vld [vmem:[%s241 + $0x498] sm:$0xff]
        %v413 = vld [vmem:[%s241 + $0x4a0] sm:$0xff]
        %v414 = vld [vmem:[%s241 + $0x4a8] sm:$0xff]
        %v415 = vld [vmem:[%s241 + $0x4b0] sm:$0xff]
        %v416 = vld [vmem:[%s241 + $0x4b8] sm:$0xff]
        %v417 = vld [vmem:[%s241 + $0x4c0] sm:$0xff]
        %v418 = vld [vmem:[%s241 + $0x4c8] sm:$0xff]
        %v419 = vld [vmem:[%s241 + $0x4d0] sm:$0xff]
        %v420 = vld [vmem:[%s241 + $0x4d8] sm:$0xff]
        %v421 = vld [vmem:[%s241 + $0x4e0] sm:$0xff]
        %v422 = vld [vmem:[%s241 + $0x4e8] sm:$0xff]
        %v423 = vld [vmem:[%s241 + $0x4f0] sm:$0xff]
        %v424 = vld [vmem:[%s241 + $0x4f8] sm:$0xff]
        %v425 = vld [vmem:[%s241 + $0x500] sm:$0xff]
        %v426 = vld [vmem:[%s241 + $0x508] sm:$0xff]
        %v427 = vld [vmem:[%s241 + $0x510] sm:$0xff]
        %v428 = vld [vmem:[%s241 + $0x518] sm:$0xff]
        %v429 = vld [vmem:[%s241 + $0x520] sm:$0xff]
        %v430 = vld [vmem:[%s241 + $0x528] sm:$0xff]
        %v431 = vld [vmem:[%s241 + $0x530] sm:$0xff]
        %v432 = vld [vmem:[%s241 + $0x538] sm:$0xff]
        %v433 = vld [vmem:[%s241 + $0x540] sm:$0xff]
        %v434 = vld [vmem:[%s241 + $0x548] sm:$0xff]
        %v435 = vld [vmem:[%s241 + $0x550] sm:$0xff]
        %v436 = vld [vmem:[%s241 + $0x558] sm:$0xff]
        %v437 = vld [vmem:[%s241 + $0x560] sm:$0xff]
        %v438 = vld [vmem:[%s241 + $0x568] sm:$0xff]
        %v439 = vld [vmem:[%s241 + $0x570] sm:$0xff]
        %v440 = vld [vmem:[%s241 + $0x578] sm:$0xff]
        %v441 = vld [vmem:[%s241 + $0x580] sm:$0xff]
        %v442 = vld [vmem:[%s241 + $0x588] sm:$0xff]
        %v443 = vld [vmem:[%s241 + $0x590] sm:$0xff]
        %v444 = vld [vmem:[%s241 + $0x598] sm:$0xff]
        %v445 = vld [vmem:[%s241 + $0x5a0] sm:$0xff]
        %v446 = vld [vmem:[%s241 + $0x5a8] sm:$0xff]
        %v447 = vld [vmem:[%s241 + $0x5b0] sm:$0xff]
        %v448 = vld [vmem:[%s241 + $0x5b8] sm:$0xff]
        %v449 = vld [vmem:[%s241 + $0x5c0] sm:$0xff]
        %v450 = vld [vmem:[%s241 + $0x5c8] sm:$0xff]
        %v451 = vld [vmem:[%s241 + $0x5d0] sm:$0xff]
        %v452 = vld [vmem:[%s241 + $0x5d8] sm:$0xff]
        %v453 = vld [vmem:[%s241 + $0x5e0] sm:$0xff]
        %v454 = vld [vmem:[%s241 + $0x5e8] sm:$0xff]
        %v455 = vld [vmem:[%s241 + $0x5f0] sm:$0xff]
        %v456 = vld [vmem:[%s241 + $0x5f8] sm:$0xff]
        %v457 = vld [vmem:[%s241 + $0x600] sm:$0xff]
        %v458 = vld [vmem:[%s241 + $0x608] sm:$0xff]
        %v459 = vld [vmem:[%s241 + $0x610] sm:$0xff]
        %v460 = vld [vmem:[%s241 + $0x618] sm:$0xff]
        %v461 = vld [vmem:[%s241 + $0x620] sm:$0xff]
        %v462 = vld [vmem:[%s241 + $0x628] sm:$0xff]
        %v463 = vld [vmem:[%s241 + $0x630] sm:$0xff]
        %v464 = vld [vmem:[%s241 + $0x638] sm:$0xff]
        %v465 = vld [vmem:[%s241 + $0x640] sm:$0xff]
        %v466 = vld [vmem:[%s241 + $0x648] sm:$0xff]
        %v467 = vld [vmem:[%s241 + $0x650] sm:$0xff]
        %v468 = vld [vmem:[%s241 + $0x658] sm:$0xff]
        %v469 = vld [vmem:[%s241 + $0x660] sm:$0xff]
        %v470 = vld [vmem:[%s241 + $0x668] sm:$0xff]
        %v471 = vld [vmem:[%s241 + $0x670] sm:$0xff]
        %v472 = vld [vmem:[%s241 + $0x678] sm:$0xff]
        %v473 = vld [vmem:[%s241 + $0x680] sm:$0xff]
        %v474 = vld [vmem:[%s241 + $0x688] sm:$0xff]
        %v475 = vld [vmem:[%s241 + $0x690] sm:$0xff]
        %v476 = vld [vmem:[%s241 + $0x698] sm:$0xff]
        %v477 = vld [vmem:[%s241 + $0x6a0] sm:$0xff]
        %v478 = vld [vmem:[%s241 + $0x6a8] sm:$0xff]
        %v479 = vld [vmem:[%s241 + $0x6b0] sm:$0xff]
        %v480 = vld [vmem:[%s241 + $0x6b8] sm:$0xff]
        %v481 = vld [vmem:[%s241 + $0x6c0] sm:$0xff]
        %v482 = vld [vmem:[%s241 + $0x6c8] sm:$0xff]
        %v483 = vld [vmem:[%s241 + $0x6d0] sm:$0xff]
        %v484 = vld [vmem:[%s241 + $0x6d8] sm:$0xff]
        %v485 = vld [vmem:[%s241 + $0x6e0] sm:$0xff]
        %v486 = vld [vmem:[%s241 + $0x6e8] sm:$0xff]
        %v487 = vld [vmem:[%s241 + $0x6f0] sm:$0xff]
        %v488 = vld [vmem:[%s241 + $0x6f8] sm:$0xff]
        %v489 = vld [vmem:[%s241 + $0x700] sm:$0xff]
        %v490 = vld [vmem:[%s241 + $0x708] sm:$0xff]
        %v491 = vld [vmem:[%s241 + $0x710] sm:$0xff]
        %v492 = vld [vmem:[%s241 + $0x718] sm:$0xff]
        %v493 = vld [vmem:[%s241 + $0x720] sm:$0xff]
        %v494 = vld [vmem:[%s241 + $0x728] sm:$0xff]
        %v495 = vld [vmem:[%s241 + $0x730] sm:$0xff]
        %v496 = vld [vmem:[%s241 + $0x738] sm:$0xff]
        %v497 = vld [vmem:[%s241 + $0x740] sm:$0xff]
        %v498 = vld [vmem:[%s241 + $0x748] sm:$0xff]
        %v499 = vld [vmem:[%s241 + $0x750] sm:$0xff]
        %v500 = vld [vmem:[%s241 + $0x758] sm:$0xff]
        %v501 = vld [vmem:[%s241 + $0x760] sm:$0xff]
        %v502 = vld [vmem:[%s241 + $0x768] sm:$0xff]
        %v503 = vld [vmem:[%s241 + $0x770] sm:$0xff]
        %v504 = vld [vmem:[%s241 + $0x778] sm:$0xff]
        %v505 = vld [vmem:[%s241 + $0x780] sm:$0xff]
        %v506 = vld [vmem:[%s241 + $0x788] sm:$0xff]
        %v507 = vld [vmem:[%s241 + $0x790] sm:$0xff]
        %v508 = vld [vmem:[%s241 + $0x798] sm:$0xff]
        %v509 = vld [vmem:[%s241 + $0x7a0] sm:$0xff]
        %v510 = vld [vmem:[%s241 + $0x7a8] sm:$0xff]
        %v511 = vld [vmem:[%s241 + $0x7b0] sm:$0xff]
        %v512 = vld [vmem:[%s241 + $0x7b8] sm:$0xff]
        %v513 = vld [vmem:[%s241 + $0x7c0] sm:$0xff]
        %v514 = vld [vmem:[%s241 + $0x7c8] sm:$0xff]
        %v515 = vld [vmem:[%s241 + $0x7d0] sm:$0xff]
        %v516 = vld [vmem:[%s241 + $0x7d8] sm:$0xff]
        %v517 = vld [vmem:[%s241 + $0x7e0] sm:$0xff]
        %v518 = vld [vmem:[%s241 + $0x7e8] sm:$0xff]
        %v519 = vld [vmem:[%s241 + $0x7f0] sm:$0xff]
        %v520 = vld [vmem:[%s241 + $0x7f8] sm:$0xff]
        %v521 = vld [vmem:[%s253] sm:$0xff]
        %v522 = vld [vmem:[%s253 + $0x8] sm:$0xff]
        %v523 = vld [vmem:[%s253 + $0x10] sm:$0xff]
        %v524 = vld [vmem:[%s253 + $0x18] sm:$0xff]
        %v525 = vld [vmem:[%s253 + $0x20] sm:$0xff]
        %v526 = vld [vmem:[%s253 + $0x28] sm:$0xff]
        %v527 = vld [vmem:[%s253 + $0x30] sm:$0xff]
        %v528 = vld [vmem:[%s253 + $0x38] sm:$0xff]
        %v529 = vld [vmem:[%s253 + $0x40] sm:$0xff]
        %v530 = vld [vmem:[%s253 + $0x48] sm:$0xff]
        %v531 = vld [vmem:[%s253 + $0x50] sm:$0xff]
        %v532 = vld [vmem:[%s253 + $0x58] sm:$0xff]
        %v533 = vld [vmem:[%s253 + $0x60] sm:$0xff]
        %v534 = vld [vmem:[%s253 + $0x68] sm:$0xff]
        %v535 = vld [vmem:[%s253 + $0x70] sm:$0xff]
        %v536 = vld [vmem:[%s253 + $0x78] sm:$0xff]
        %v537 = vld [vmem:[%s253 + $0x80] sm:$0xff]
        %v538 = vld [vmem:[%s253 + $0x88] sm:$0xff]
        %v539 = vld [vmem:[%s253 + $0x90] sm:$0xff]
        %v540 = vld [vmem:[%s253 + $0x98] sm:$0xff]
        %v541 = vld [vmem:[%s253 + $0xa0] sm:$0xff]
        %v542 = vld [vmem:[%s253 + $0xa8] sm:$0xff]
        %v543 = vld [vmem:[%s253 + $0xb0] sm:$0xff]
        %v544 = vld [vmem:[%s253 + $0xb8] sm:$0xff]
        %v545 = vld [vmem:[%s253 + $0xc0] sm:$0xff]
        %v546 = vld [vmem:[%s253 + $0xc8] sm:$0xff]
        %v547 = vld [vmem:[%s253 + $0xd0] sm:$0xff]
        %v548 = vld [vmem:[%s253 + $0xd8] sm:$0xff]
        %v549 = vld [vmem:[%s253 + $0xe0] sm:$0xff]
        %v550 = vld [vmem:[%s253 + $0xe8] sm:$0xff]
        %v551 = vld [vmem:[%s253 + $0xf0] sm:$0xff]
        %v552 = vld [vmem:[%s253 + $0xf8] sm:$0xff]
        %v553 = vld [vmem:[%s253 + $0x100] sm:$0xff]
        %v554 = vld [vmem:[%s253 + $0x108] sm:$0xff]
        %v555 = vld [vmem:[%s253 + $0x110] sm:$0xff]
        %v556 = vld [vmem:[%s253 + $0x118] sm:$0xff]
        %v557 = vld [vmem:[%s253 + $0x120] sm:$0xff]
        %v558 = vld [vmem:[%s253 + $0x128] sm:$0xff]
        %v559 = vld [vmem:[%s253 + $0x130] sm:$0xff]
        %v560 = vld [vmem:[%s253 + $0x138] sm:$0xff]
        %v561 = vld [vmem:[%s253 + $0x140] sm:$0xff]
        %v562 = vld [vmem:[%s253 + $0x148] sm:$0xff]
        %v563 = vld [vmem:[%s253 + $0x150] sm:$0xff]
        %v564 = vld [vmem:[%s253 + $0x158] sm:$0xff]
        %v565 = vld [vmem:[%s253 + $0x160] sm:$0xff]
        %v566 = vld [vmem:[%s253 + $0x168] sm:$0xff]
        %v567 = vld [vmem:[%s253 + $0x170] sm:$0xff]
        %v568 = vld [vmem:[%s253 + $0x178] sm:$0xff]
        %v569 = vld [vmem:[%s253 + $0x180] sm:$0xff]
        %v570 = vld [vmem:[%s253 + $0x188] sm:$0xff]
        %v571 = vld [vmem:[%s253 + $0x190] sm:$0xff]
        %v572 = vld [vmem:[%s253 + $0x198] sm:$0xff]
        %v573 = vld [vmem:[%s253 + $0x1a0] sm:$0xff]
        %v574 = vld [vmem:[%s253 + $0x1a8] sm:$0xff]
        %v575 = vld [vmem:[%s253 + $0x1b0] sm:$0xff]
        %v576 = vld [vmem:[%s253 + $0x1b8] sm:$0xff]
        %v577 = vld [vmem:[%s253 + $0x1c0] sm:$0xff]
        %v578 = vld [vmem:[%s253 + $0x1c8] sm:$0xff]
        %v579 = vld [vmem:[%s253 + $0x1d0] sm:$0xff]
        %v580 = vld [vmem:[%s253 + $0x1d8] sm:$0xff]
        %v581 = vld [vmem:[%s253 + $0x1e0] sm:$0xff]
        %v582 = vld [vmem:[%s253 + $0x1e8] sm:$0xff]
        %v583 = vld [vmem:[%s253 + $0x1f0] sm:$0xff]
        %v584 = vld [vmem:[%s253 + $0x1f8] sm:$0xff]
        %v585 = vld [vmem:[%s253 + $0x200] sm:$0xff]
        %v586 = vld [vmem:[%s253 + $0x208] sm:$0xff]
        %v587 = vld [vmem:[%s253 + $0x210] sm:$0xff]
        %v588 = vld [vmem:[%s253 + $0x218] sm:$0xff]
        %v589 = vld [vmem:[%s253 + $0x220] sm:$0xff]
        %v590 = vld [vmem:[%s253 + $0x228] sm:$0xff]
        %v591 = vld [vmem:[%s253 + $0x230] sm:$0xff]
        %v592 = vld [vmem:[%s253 + $0x238] sm:$0xff]
        %v593 = vld [vmem:[%s253 + $0x240] sm:$0xff]
        %v594 = vld [vmem:[%s253 + $0x248] sm:$0xff]
        %v595 = vld [vmem:[%s253 + $0x250] sm:$0xff]
        %v596 = vld [vmem:[%s253 + $0x258] sm:$0xff]
        %v597 = vld [vmem:[%s253 + $0x260] sm:$0xff]
        %v598 = vld [vmem:[%s253 + $0x268] sm:$0xff]
        %v599 = vld [vmem:[%s253 + $0x270] sm:$0xff]
        %v600 = vld [vmem:[%s253 + $0x278] sm:$0xff]
        %v601 = vld [vmem:[%s253 + $0x280] sm:$0xff]
        %v602 = vld [vmem:[%s253 + $0x288] sm:$0xff]
        %v603 = vld [vmem:[%s253 + $0x290] sm:$0xff]
        %v604 = vld [vmem:[%s253 + $0x298] sm:$0xff]
        %v605 = vld [vmem:[%s253 + $0x2a0] sm:$0xff]
        %v606 = vld [vmem:[%s253 + $0x2a8] sm:$0xff]
        %v607 = vld [vmem:[%s253 + $0x2b0] sm:$0xff]
        %v608 = vld [vmem:[%s253 + $0x2b8] sm:$0xff]
        %v609 = vld [vmem:[%s253 + $0x2c0] sm:$0xff]
        %v610 = vld [vmem:[%s253 + $0x2c8] sm:$0xff]
        %v611 = vld [vmem:[%s253 + $0x2d0] sm:$0xff]
        %v612 = vld [vmem:[%s253 + $0x2d8] sm:$0xff]
        %v613 = vld [vmem:[%s253 + $0x2e0] sm:$0xff]
        %v614 = vld [vmem:[%s253 + $0x2e8] sm:$0xff]
        %v615 = vld [vmem:[%s253 + $0x2f0] sm:$0xff]
        %v616 = vld [vmem:[%s253 + $0x2f8] sm:$0xff]
        %v617 = vld [vmem:[%s253 + $0x300] sm:$0xff]
        %v618 = vld [vmem:[%s253 + $0x308] sm:$0xff]
        %v619 = vld [vmem:[%s253 + $0x310] sm:$0xff]
        %v620 = vld [vmem:[%s253 + $0x318] sm:$0xff]
        %v621 = vld [vmem:[%s253 + $0x320] sm:$0xff]
        %v622 = vld [vmem:[%s253 + $0x328] sm:$0xff]
        %v623 = vld [vmem:[%s253 + $0x330] sm:$0xff]
        %v624 = vld [vmem:[%s253 + $0x338] sm:$0xff]
        %v625 = vld [vmem:[%s253 + $0x340] sm:$0xff]
        %v626 = vld [vmem:[%s253 + $0x348] sm:$0xff]
        %v627 = vld [vmem:[%s253 + $0x350] sm:$0xff]
        %v628 = vld [vmem:[%s253 + $0x358] sm:$0xff]
        %v629 = vld [vmem:[%s253 + $0x360] sm:$0xff]
        %v630 = vld [vmem:[%s253 + $0x368] sm:$0xff]
        %v631 = vld [vmem:[%s253 + $0x370] sm:$0xff]
        %v632 = vld [vmem:[%s253 + $0x378] sm:$0xff]
        %v633 = vld [vmem:[%s253 + $0x380] sm:$0xff]
        %v634 = vld [vmem:[%s253 + $0x388] sm:$0xff]
        %v635 = vld [vmem:[%s253 + $0x390] sm:$0xff]
        %v636 = vld [vmem:[%s253 + $0x398] sm:$0xff]
        %v637 = vld [vmem:[%s253 + $0x3a0] sm:$0xff]
        %v638 = vld [vmem:[%s253 + $0x3a8] sm:$0xff]
        %v639 = vld [vmem:[%s253 + $0x3b0] sm:$0xff]
        %v640 = vld [vmem:[%s253 + $0x3b8] sm:$0xff]
        %v641 = vld [vmem:[%s253 + $0x3c0] sm:$0xff]
        %v642 = vld [vmem:[%s253 + $0x3c8] sm:$0xff]
        %v643 = vld [vmem:[%s253 + $0x3d0] sm:$0xff]
        %v644 = vld [vmem:[%s253 + $0x3d8] sm:$0xff]
        %v645 = vld [vmem:[%s253 + $0x3e0] sm:$0xff]
        %v646 = vld [vmem:[%s253 + $0x3e8] sm:$0xff]
        %v647 = vld [vmem:[%s253 + $0x3f0] sm:$0xff]
        %v648 = vld [vmem:[%s253 + $0x3f8] sm:$0xff]
        %v649 = vld [vmem:[%s253 + $0x400] sm:$0xff]
        %v650 = vld [vmem:[%s253 + $0x408] sm:$0xff]
        %v651 = vld [vmem:[%s253 + $0x410] sm:$0xff]
        %v652 = vld [vmem:[%s253 + $0x418] sm:$0xff]
        %v653 = vld [vmem:[%s253 + $0x420] sm:$0xff]
        %v654 = vld [vmem:[%s253 + $0x428] sm:$0xff]
        %v655 = vld [vmem:[%s253 + $0x430] sm:$0xff]
        %v656 = vld [vmem:[%s253 + $0x438] sm:$0xff]
        %v657 = vld [vmem:[%s253 + $0x440] sm:$0xff]
        %v658 = vld [vmem:[%s253 + $0x448] sm:$0xff]
        %v659 = vld [vmem:[%s253 + $0x450] sm:$0xff]
        %v660 = vld [vmem:[%s253 + $0x458] sm:$0xff]
        %v661 = vld [vmem:[%s253 + $0x460] sm:$0xff]
        %v662 = vld [vmem:[%s253 + $0x468] sm:$0xff]
        %v663 = vld [vmem:[%s253 + $0x470] sm:$0xff]
        %v664 = vld [vmem:[%s253 + $0x478] sm:$0xff]
        %v665 = vld [vmem:[%s253 + $0x480] sm:$0xff]
        %v666 = vld [vmem:[%s253 + $0x488] sm:$0xff]
        %v667 = vld [vmem:[%s253 + $0x490] sm:$0xff]
        %v668 = vld [vmem:[%s253 + $0x498] sm:$0xff]
        %v669 = vld [vmem:[%s253 + $0x4a0] sm:$0xff]
        %v670 = vld [vmem:[%s253 + $0x4a8] sm:$0xff]
        %v671 = vld [vmem:[%s253 + $0x4b0] sm:$0xff]
        %v672 = vld [vmem:[%s253 + $0x4b8] sm:$0xff]
        %v673 = vld [vmem:[%s253 + $0x4c0] sm:$0xff]
        %v674 = vld [vmem:[%s253 + $0x4c8] sm:$0xff]
        %v675 = vld [vmem:[%s253 + $0x4d0] sm:$0xff]
        %v676 = vld [vmem:[%s253 + $0x4d8] sm:$0xff]
        %v677 = vld [vmem:[%s253 + $0x4e0] sm:$0xff]
        %v678 = vld [vmem:[%s253 + $0x4e8] sm:$0xff]
        %v679 = vld [vmem:[%s253 + $0x4f0] sm:$0xff]
        %v680 = vld [vmem:[%s253 + $0x4f8] sm:$0xff]
        %v681 = vld [vmem:[%s253 + $0x500] sm:$0xff]
        %v682 = vld [vmem:[%s253 + $0x508] sm:$0xff]
        %v683 = vld [vmem:[%s253 + $0x510] sm:$0xff]
        %v684 = vld [vmem:[%s253 + $0x518] sm:$0xff]
        %v685 = vld [vmem:[%s253 + $0x520] sm:$0xff]
        %v686 = vld [vmem:[%s253 + $0x528] sm:$0xff]
        %v687 = vld [vmem:[%s253 + $0x530] sm:$0xff]
        %v688 = vld [vmem:[%s253 + $0x538] sm:$0xff]
        %v689 = vld [vmem:[%s253 + $0x540] sm:$0xff]
        %v690 = vld [vmem:[%s253 + $0x548] sm:$0xff]
        %v691 = vld [vmem:[%s253 + $0x550] sm:$0xff]
        %v692 = vld [vmem:[%s253 + $0x558] sm:$0xff]
        %v693 = vld [vmem:[%s253 + $0x560] sm:$0xff]
        %v694 = vld [vmem:[%s253 + $0x568] sm:$0xff]
        %v695 = vld [vmem:[%s253 + $0x570] sm:$0xff]
        %v696 = vld [vmem:[%s253 + $0x578] sm:$0xff]
        %v697 = vld [vmem:[%s253 + $0x580] sm:$0xff]
        %v698 = vld [vmem:[%s253 + $0x588] sm:$0xff]
        %v699 = vld [vmem:[%s253 + $0x590] sm:$0xff]
        %v700 = vld [vmem:[%s253 + $0x598] sm:$0xff]
        %v701 = vld [vmem:[%s253 + $0x5a0] sm:$0xff]
        %v702 = vld [vmem:[%s253 + $0x5a8] sm:$0xff]
        %v703 = vld [vmem:[%s253 + $0x5b0] sm:$0xff]
        %v704 = vld [vmem:[%s253 + $0x5b8] sm:$0xff]
        %v705 = vld [vmem:[%s253 + $0x5c0] sm:$0xff]
        %v706 = vld [vmem:[%s253 + $0x5c8] sm:$0xff]
        %v707 = vld [vmem:[%s253 + $0x5d0] sm:$0xff]
        %v708 = vld [vmem:[%s253 + $0x5d8] sm:$0xff]
        %v709 = vld [vmem:[%s253 + $0x5e0] sm:$0xff]
        %v710 = vld [vmem:[%s253 + $0x5e8] sm:$0xff]
        %v711 = vld [vmem:[%s253 + $0x5f0] sm:$0xff]
        %v712 = vld [vmem:[%s253 + $0x5f8] sm:$0xff]
        %v713 = vld [vmem:[%s253 + $0x600] sm:$0xff]
        %v714 = vld [vmem:[%s253 + $0x608] sm:$0xff]
        %v715 = vld [vmem:[%s253 + $0x610] sm:$0xff]
        %v716 = vld [vmem:[%s253 + $0x618] sm:$0xff]
        %v717 = vld [vmem:[%s253 + $0x620] sm:$0xff]
        %v718 = vld [vmem:[%s253 + $0x628] sm:$0xff]
        %v719 = vld [vmem:[%s253 + $0x630] sm:$0xff]
        %v720 = vld [vmem:[%s253 + $0x638] sm:$0xff]
        %v721 = vld [vmem:[%s253 + $0x640] sm:$0xff]
        %v722 = vld [vmem:[%s253 + $0x648] sm:$0xff]
        %v723 = vld [vmem:[%s253 + $0x650] sm:$0xff]
        %v724 = vld [vmem:[%s253 + $0x658] sm:$0xff]
        %v725 = vld [vmem:[%s253 + $0x660] sm:$0xff]
        %v726 = vld [vmem:[%s253 + $0x668] sm:$0xff]
        %v727 = vld [vmem:[%s253 + $0x670] sm:$0xff]
        %v728 = vld [vmem:[%s253 + $0x678] sm:$0xff]
        %v729 = vld [vmem:[%s253 + $0x680] sm:$0xff]
        %v730 = vld [vmem:[%s253 + $0x688] sm:$0xff]
        %v731 = vld [vmem:[%s253 + $0x690] sm:$0xff]
        %v732 = vld [vmem:[%s253 + $0x698] sm:$0xff]
        %v733 = vld [vmem:[%s253 + $0x6a0] sm:$0xff]
        %v734 = vld [vmem:[%s253 + $0x6a8] sm:$0xff]
        %v735 = vld [vmem:[%s253 + $0x6b0] sm:$0xff]
        %v736 = vld [vmem:[%s253 + $0x6b8] sm:$0xff]
        %v737 = vld [vmem:[%s253 + $0x6c0] sm:$0xff]
        %v738 = vld [vmem:[%s253 + $0x6c8] sm:$0xff]
        %v739 = vld [vmem:[%s253 + $0x6d0] sm:$0xff]
        %v740 = vld [vmem:[%s253 + $0x6d8] sm:$0xff]
        %v741 = vld [vmem:[%s253 + $0x6e0] sm:$0xff]
        %v742 = vld [vmem:[%s253 + $0x6e8] sm:$0xff]
        %v743 = vld [vmem:[%s253 + $0x6f0] sm:$0xff]
        %v744 = vld [vmem:[%s253 + $0x6f8] sm:$0xff]
        %v745 = vld [vmem:[%s253 + $0x700] sm:$0xff]
        %v746 = vld [vmem:[%s253 + $0x708] sm:$0xff]
        %v747 = vld [vmem:[%s253 + $0x710] sm:$0xff]
        %v748 = vld [vmem:[%s253 + $0x718] sm:$0xff]
        %v749 = vld [vmem:[%s253 + $0x720] sm:$0xff]
        %v750 = vld [vmem:[%s253 + $0x728] sm:$0xff]
        %v751 = vld [vmem:[%s253 + $0x730] sm:$0xff]
        %v752 = vld [vmem:[%s253 + $0x738] sm:$0xff]
        %v753 = vld [vmem:[%s253 + $0x740] sm:$0xff]
        %v754 = vld [vmem:[%s253 + $0x748] sm:$0xff]
        %v755 = vld [vmem:[%s253 + $0x750] sm:$0xff]
        %v756 = vld [vmem:[%s253 + $0x758] sm:$0xff]
        %v757 = vld [vmem:[%s253 + $0x760] sm:$0xff]
        %v758 = vld [vmem:[%s253 + $0x768] sm:$0xff]
        %v759 = vld [vmem:[%s253 + $0x770] sm:$0xff]
        %v760 = vld [vmem:[%s253 + $0x778] sm:$0xff]
        %v761 = vld [vmem:[%s253 + $0x780] sm:$0xff]
        %v762 = vld [vmem:[%s253 + $0x788] sm:$0xff]
        %v763 = vld [vmem:[%s253 + $0x790] sm:$0xff]
        %v764 = vld [vmem:[%s253 + $0x798] sm:$0xff]
        %v765 = vld [vmem:[%s253 + $0x7a0] sm:$0xff]
        %v766 = vld [vmem:[%s253 + $0x7a8] sm:$0xff]
        %v767 = vld [vmem:[%s253 + $0x7b0] sm:$0xff]
        %v768 = vld [vmem:[%s253 + $0x7b8] sm:$0xff]
        %v769 = vld [vmem:[%s253 + $0x7c0] sm:$0xff]
        %v770 = vld [vmem:[%s253 + $0x7c8] sm:$0xff]
        %v771 = vld [vmem:[%s253 + $0x7d0] sm:$0xff]
        %v772 = vld [vmem:[%s253 + $0x7d8] sm:$0xff]
        %v773 = vld [vmem:[%s253 + $0x7e0] sm:$0xff]
        %v774 = vld [vmem:[%s253 + $0x7e8] sm:$0xff]
        %v775 = vld [vmem:[%s253 + $0x7f0] sm:$0xff]
        %v776 = vld [vmem:[%s253 + $0x7f8] sm:$0xff]
        %778 = vset.pattern.permute.xlu0 0
        %779 = vperm.xlu0 %778, %v521
        %v780 = vpop.permute.xlu0 %779
        %783 = vset.pattern.permute.xlu0 0
        %784 = vperm.xlu0 %783, %v522
        %v785 = vpop.permute.xlu0 %784
        %788 = vset.pattern.permute.xlu0 0
        %789 = vperm.xlu0 %788, %v523
        %v790 = vpop.permute.xlu0 %789
        %793 = vset.pattern.permute.xlu0 0
        %794 = vperm.xlu0 %793, %v524
        %v795 = vpop.permute.xlu0 %794
        %798 = vset.pattern.permute.xlu0 0
        %799 = vperm.xlu0 %798, %v525
        %v800 = vpop.permute.xlu0 %799
        %803 = vset.pattern.permute.xlu0 0
        %804 = vperm.xlu0 %803, %v526
        %v805 = vpop.permute.xlu0 %804
        %808 = vset.pattern.permute.xlu0 0
        %809 = vperm.xlu0 %808, %v527
        %v810 = vpop.permute.xlu0 %809
        %813 = vset.pattern.permute.xlu0 0
        %814 = vperm.xlu0 %813, %v528
        %v815 = vpop.permute.xlu0 %814
        %818 = vset.pattern.permute.xlu0 0
        %819 = vperm.xlu0 %818, %v529
        %v820 = vpop.permute.xlu0 %819
        %823 = vset.pattern.permute.xlu0 0
        %824 = vperm.xlu0 %823, %v530
        %v825 = vpop.permute.xlu0 %824
        %828 = vset.pattern.permute.xlu0 0
        %829 = vperm.xlu0 %828, %v531
        %v830 = vpop.permute.xlu0 %829
        %833 = vset.pattern.permute.xlu0 0
        %834 = vperm.xlu0 %833, %v532
        %v835 = vpop.permute.xlu0 %834
        %838 = vset.pattern.permute.xlu0 0
        %839 = vperm.xlu0 %838, %v533
        %v840 = vpop.permute.xlu0 %839
        %843 = vset.pattern.permute.xlu0 0
        %844 = vperm.xlu0 %843, %v534
        %v845 = vpop.permute.xlu0 %844
        %848 = vset.pattern.permute.xlu0 0
        %849 = vperm.xlu0 %848, %v535
        %v850 = vpop.permute.xlu0 %849
        %853 = vset.pattern.permute.xlu0 0
        %854 = vperm.xlu0 %853, %v536
        %v855 = vpop.permute.xlu0 %854
        %858 = vset.pattern.permute.xlu0 0
        %859 = vperm.xlu0 %858, %v537
        %v860 = vpop.permute.xlu0 %859
        %863 = vset.pattern.permute.xlu0 0
        %864 = vperm.xlu0 %863, %v538
        %v865 = vpop.permute.xlu0 %864
        %868 = vset.pattern.permute.xlu0 0
        %869 = vperm.xlu0 %868, %v539
        %v870 = vpop.permute.xlu0 %869
        %873 = vset.pattern.permute.xlu0 0
        %874 = vperm.xlu0 %873, %v540
        %v875 = vpop.permute.xlu0 %874
        %878 = vset.pattern.permute.xlu0 0
        %879 = vperm.xlu0 %878, %v541
        %v880 = vpop.permute.xlu0 %879
        %883 = vset.pattern.permute.xlu0 0
        %884 = vperm.xlu0 %883, %v542
        %v885 = vpop.permute.xlu0 %884
        %888 = vset.pattern.permute.xlu0 0
        %889 = vperm.xlu0 %888, %v543
        %v890 = vpop.permute.xlu0 %889
        %893 = vset.pattern.permute.xlu0 0
        %894 = vperm.xlu0 %893, %v544
        %v895 = vpop.permute.xlu0 %894
        %898 = vset.pattern.permute.xlu0 0
        %899 = vperm.xlu0 %898, %v545
        %v900 = vpop.permute.xlu0 %899
        %903 = vset.pattern.permute.xlu0 0
        %904 = vperm.xlu0 %903, %v546
        %v905 = vpop.permute.xlu0 %904
        %908 = vset.pattern.permute.xlu0 0
        %909 = vperm.xlu0 %908, %v547
        %v910 = vpop.permute.xlu0 %909
        %913 = vset.pattern.permute.xlu0 0
        %914 = vperm.xlu0 %913, %v548
        %v915 = vpop.permute.xlu0 %914
        %918 = vset.pattern.permute.xlu0 0
        %919 = vperm.xlu0 %918, %v549
        %v920 = vpop.permute.xlu0 %919
        %923 = vset.pattern.permute.xlu0 0
        %924 = vperm.xlu0 %923, %v550
        %v925 = vpop.permute.xlu0 %924
        %928 = vset.pattern.permute.xlu0 0
        %929 = vperm.xlu0 %928, %v551
        %v930 = vpop.permute.xlu0 %929
        %933 = vset.pattern.permute.xlu0 0
        %934 = vperm.xlu0 %933, %v552
        %v935 = vpop.permute.xlu0 %934
        %938 = vset.pattern.permute.xlu0 0
        %939 = vperm.xlu0 %938, %v553
        %v940 = vpop.permute.xlu0 %939
        %943 = vset.pattern.permute.xlu0 0
        %944 = vperm.xlu0 %943, %v554
        %v945 = vpop.permute.xlu0 %944
        %948 = vset.pattern.permute.xlu0 0
        %949 = vperm.xlu0 %948, %v555
        %v950 = vpop.permute.xlu0 %949
        %953 = vset.pattern.permute.xlu0 0
        %954 = vperm.xlu0 %953, %v556
        %v955 = vpop.permute.xlu0 %954
        %958 = vset.pattern.permute.xlu0 0
        %959 = vperm.xlu0 %958, %v557
        %v960 = vpop.permute.xlu0 %959
        %963 = vset.pattern.permute.xlu0 0
        %964 = vperm.xlu0 %963, %v558
        %v965 = vpop.permute.xlu0 %964
        %968 = vset.pattern.permute.xlu0 0
        %969 = vperm.xlu0 %968, %v559
        %v970 = vpop.permute.xlu0 %969
        %973 = vset.pattern.permute.xlu0 0
        %974 = vperm.xlu0 %973, %v560
        %v975 = vpop.permute.xlu0 %974
        %978 = vset.pattern.permute.xlu0 0
        %979 = vperm.xlu0 %978, %v561
        %v980 = vpop.permute.xlu0 %979
        %983 = vset.pattern.permute.xlu0 0
        %984 = vperm.xlu0 %983, %v562
        %v985 = vpop.permute.xlu0 %984
        %988 = vset.pattern.permute.xlu0 0
        %989 = vperm.xlu0 %988, %v563
        %v990 = vpop.permute.xlu0 %989
        %993 = vset.pattern.permute.xlu0 0
        %994 = vperm.xlu0 %993, %v564
        %v995 = vpop.permute.xlu0 %994
        %998 = vset.pattern.permute.xlu0 0
        %999 = vperm.xlu0 %998, %v565
        %v1000 = vpop.permute.xlu0 %999
        %1003 = vset.pattern.permute.xlu0 0
        %1004 = vperm.xlu0 %1003, %v566
        %v1005 = vpop.permute.xlu0 %1004
        %1008 = vset.pattern.permute.xlu0 0
        %1009 = vperm.xlu0 %1008, %v567
        %v1010 = vpop.permute.xlu0 %1009
        %1013 = vset.pattern.permute.xlu0 0
        %1014 = vperm.xlu0 %1013, %v568
        %v1015 = vpop.permute.xlu0 %1014
        %1018 = vset.pattern.permute.xlu0 0
        %1019 = vperm.xlu0 %1018, %v569
        %v1020 = vpop.permute.xlu0 %1019
        %1023 = vset.pattern.permute.xlu0 0
        %1024 = vperm.xlu0 %1023, %v570
        %v1025 = vpop.permute.xlu0 %1024
        %1028 = vset.pattern.permute.xlu0 0
        %1029 = vperm.xlu0 %1028, %v571
        %v1030 = vpop.permute.xlu0 %1029
        %1033 = vset.pattern.permute.xlu0 0
        %1034 = vperm.xlu0 %1033, %v572
        %v1035 = vpop.permute.xlu0 %1034
        %1038 = vset.pattern.permute.xlu0 0
        %1039 = vperm.xlu0 %1038, %v573
        %v1040 = vpop.permute.xlu0 %1039
        %1043 = vset.pattern.permute.xlu0 0
        %1044 = vperm.xlu0 %1043, %v574
        %v1045 = vpop.permute.xlu0 %1044
        %1048 = vset.pattern.permute.xlu0 0
        %1049 = vperm.xlu0 %1048, %v575
        %v1050 = vpop.permute.xlu0 %1049
        %1053 = vset.pattern.permute.xlu0 0
        %1054 = vperm.xlu0 %1053, %v576
        %v1055 = vpop.permute.xlu0 %1054
        %1058 = vset.pattern.permute.xlu0 0
        %1059 = vperm.xlu0 %1058, %v577
        %v1060 = vpop.permute.xlu0 %1059
        %1063 = vset.pattern.permute.xlu0 0
        %1064 = vperm.xlu0 %1063, %v578
        %v1065 = vpop.permute.xlu0 %1064
        %1068 = vset.pattern.permute.xlu0 0
        %1069 = vperm.xlu0 %1068, %v579
        %v1070 = vpop.permute.xlu0 %1069
        %1073 = vset.pattern.permute.xlu0 0
        %1074 = vperm.xlu0 %1073, %v580
        %v1075 = vpop.permute.xlu0 %1074
        %1078 = vset.pattern.permute.xlu0 0
        %1079 = vperm.xlu0 %1078, %v581
        %v1080 = vpop.permute.xlu0 %1079
        %1083 = vset.pattern.permute.xlu0 0
        %1084 = vperm.xlu0 %1083, %v582
        %v1085 = vpop.permute.xlu0 %1084
        %1088 = vset.pattern.permute.xlu0 0
        %1089 = vperm.xlu0 %1088, %v583
        %v1090 = vpop.permute.xlu0 %1089
        %1093 = vset.pattern.permute.xlu0 0
        %1094 = vperm.xlu0 %1093, %v584
        %v1095 = vpop.permute.xlu0 %1094
        %1098 = vset.pattern.permute.xlu0 0
        %1099 = vperm.xlu0 %1098, %v585
        %v1100 = vpop.permute.xlu0 %1099
        %1103 = vset.pattern.permute.xlu0 0
        %1104 = vperm.xlu0 %1103, %v586
        %v1105 = vpop.permute.xlu0 %1104
        %1108 = vset.pattern.permute.xlu0 0
        %1109 = vperm.xlu0 %1108, %v587
        %v1110 = vpop.permute.xlu0 %1109
        %1113 = vset.pattern.permute.xlu0 0
        %1114 = vperm.xlu0 %1113, %v588
        %v1115 = vpop.permute.xlu0 %1114
        %1118 = vset.pattern.permute.xlu0 0
        %1119 = vperm.xlu0 %1118, %v589
        %v1120 = vpop.permute.xlu0 %1119
        %1123 = vset.pattern.permute.xlu0 0
        %1124 = vperm.xlu0 %1123, %v590
        %v1125 = vpop.permute.xlu0 %1124
        %1128 = vset.pattern.permute.xlu0 0
        %1129 = vperm.xlu0 %1128, %v591
        %v1130 = vpop.permute.xlu0 %1129
        %1133 = vset.pattern.permute.xlu0 0
        %1134 = vperm.xlu0 %1133, %v592
        %v1135 = vpop.permute.xlu0 %1134
        %1138 = vset.pattern.permute.xlu0 0
        %1139 = vperm.xlu0 %1138, %v593
        %v1140 = vpop.permute.xlu0 %1139
        %1143 = vset.pattern.permute.xlu0 0
        %1144 = vperm.xlu0 %1143, %v594
        %v1145 = vpop.permute.xlu0 %1144
        %1148 = vset.pattern.permute.xlu0 0
        %1149 = vperm.xlu0 %1148, %v595
        %v1150 = vpop.permute.xlu0 %1149
        %1153 = vset.pattern.permute.xlu0 0
        %1154 = vperm.xlu0 %1153, %v596
        %v1155 = vpop.permute.xlu0 %1154
        %1158 = vset.pattern.permute.xlu0 0
        %1159 = vperm.xlu0 %1158, %v597
        %v1160 = vpop.permute.xlu0 %1159
        %1163 = vset.pattern.permute.xlu0 0
        %1164 = vperm.xlu0 %1163, %v598
        %v1165 = vpop.permute.xlu0 %1164
        %1168 = vset.pattern.permute.xlu0 0
        %1169 = vperm.xlu0 %1168, %v599
        %v1170 = vpop.permute.xlu0 %1169
        %1173 = vset.pattern.permute.xlu0 0
        %1174 = vperm.xlu0 %1173, %v600
        %v1175 = vpop.permute.xlu0 %1174
        %1178 = vset.pattern.permute.xlu0 0
        %1179 = vperm.xlu0 %1178, %v601
        %v1180 = vpop.permute.xlu0 %1179
        %1183 = vset.pattern.permute.xlu0 0
        %1184 = vperm.xlu0 %1183, %v602
        %v1185 = vpop.permute.xlu0 %1184
        %1188 = vset.pattern.permute.xlu0 0
        %1189 = vperm.xlu0 %1188, %v603
        %v1190 = vpop.permute.xlu0 %1189
        %1193 = vset.pattern.permute.xlu0 0
        %1194 = vperm.xlu0 %1193, %v604
        %v1195 = vpop.permute.xlu0 %1194
        %1198 = vset.pattern.permute.xlu0 0
        %1199 = vperm.xlu0 %1198, %v605
        %v1200 = vpop.permute.xlu0 %1199
        %1203 = vset.pattern.permute.xlu0 0
        %1204 = vperm.xlu0 %1203, %v606
        %v1205 = vpop.permute.xlu0 %1204
        %1208 = vset.pattern.permute.xlu0 0
        %1209 = vperm.xlu0 %1208, %v607
        %v1210 = vpop.permute.xlu0 %1209
        %1213 = vset.pattern.permute.xlu0 0
        %1214 = vperm.xlu0 %1213, %v608
        %v1215 = vpop.permute.xlu0 %1214
        %1218 = vset.pattern.permute.xlu0 0
        %1219 = vperm.xlu0 %1218, %v609
        %v1220 = vpop.permute.xlu0 %1219
        %1223 = vset.pattern.permute.xlu0 0
        %1224 = vperm.xlu0 %1223, %v610
        %v1225 = vpop.permute.xlu0 %1224
        %1228 = vset.pattern.permute.xlu0 0
        %1229 = vperm.xlu0 %1228, %v611
        %v1230 = vpop.permute.xlu0 %1229
        %1233 = vset.pattern.permute.xlu0 0
        %1234 = vperm.xlu0 %1233, %v612
        %v1235 = vpop.permute.xlu0 %1234
        %1238 = vset.pattern.permute.xlu0 0
        %1239 = vperm.xlu0 %1238, %v613
        %v1240 = vpop.permute.xlu0 %1239
        %1243 = vset.pattern.permute.xlu0 0
        %1244 = vperm.xlu0 %1243, %v614
        %v1245 = vpop.permute.xlu0 %1244
        %1248 = vset.pattern.permute.xlu0 0
        %1249 = vperm.xlu0 %1248, %v615
        %v1250 = vpop.permute.xlu0 %1249
        %1253 = vset.pattern.permute.xlu0 0
        %1254 = vperm.xlu0 %1253, %v616
        %v1255 = vpop.permute.xlu0 %1254
        %1258 = vset.pattern.permute.xlu0 0
        %1259 = vperm.xlu0 %1258, %v617
        %v1260 = vpop.permute.xlu0 %1259
        %1263 = vset.pattern.permute.xlu0 0
        %1264 = vperm.xlu0 %1263, %v618
        %v1265 = vpop.permute.xlu0 %1264
        %1268 = vset.pattern.permute.xlu0 0
        %1269 = vperm.xlu0 %1268, %v619
        %v1270 = vpop.permute.xlu0 %1269
        %1273 = vset.pattern.permute.xlu0 0
        %1274 = vperm.xlu0 %1273, %v620
        %v1275 = vpop.permute.xlu0 %1274
        %1278 = vset.pattern.permute.xlu0 0
        %1279 = vperm.xlu0 %1278, %v621
        %v1280 = vpop.permute.xlu0 %1279
        %1283 = vset.pattern.permute.xlu0 0
        %1284 = vperm.xlu0 %1283, %v622
        %v1285 = vpop.permute.xlu0 %1284
        %1288 = vset.pattern.permute.xlu0 0
        %1289 = vperm.xlu0 %1288, %v623
        %v1290 = vpop.permute.xlu0 %1289
        %1293 = vset.pattern.permute.xlu0 0
        %1294 = vperm.xlu0 %1293, %v624
        %v1295 = vpop.permute.xlu0 %1294
        %1298 = vset.pattern.permute.xlu0 0
        %1299 = vperm.xlu0 %1298, %v625
        %v1300 = vpop.permute.xlu0 %1299
        %1303 = vset.pattern.permute.xlu0 0
        %1304 = vperm.xlu0 %1303, %v626
        %v1305 = vpop.permute.xlu0 %1304
        %1308 = vset.pattern.permute.xlu0 0
        %1309 = vperm.xlu0 %1308, %v627
        %v1310 = vpop.permute.xlu0 %1309
        %1313 = vset.pattern.permute.xlu0 0
        %1314 = vperm.xlu0 %1313, %v628
        %v1315 = vpop.permute.xlu0 %1314
        %1318 = vset.pattern.permute.xlu0 0
        %1319 = vperm.xlu0 %1318, %v629
        %v1320 = vpop.permute.xlu0 %1319
        %1323 = vset.pattern.permute.xlu0 0
        %1324 = vperm.xlu0 %1323, %v630
        %v1325 = vpop.permute.xlu0 %1324
        %1328 = vset.pattern.permute.xlu0 0
        %1329 = vperm.xlu0 %1328, %v631
        %v1330 = vpop.permute.xlu0 %1329
        %1333 = vset.pattern.permute.xlu0 0
        %1334 = vperm.xlu0 %1333, %v632
        %v1335 = vpop.permute.xlu0 %1334
        %1338 = vset.pattern.permute.xlu0 0
        %1339 = vperm.xlu0 %1338, %v633
        %v1340 = vpop.permute.xlu0 %1339
        %1343 = vset.pattern.permute.xlu0 0
        %1344 = vperm.xlu0 %1343, %v634
        %v1345 = vpop.permute.xlu0 %1344
        %1348 = vset.pattern.permute.xlu0 0
        %1349 = vperm.xlu0 %1348, %v635
        %v1350 = vpop.permute.xlu0 %1349
        %1353 = vset.pattern.permute.xlu0 0
        %1354 = vperm.xlu0 %1353, %v636
        %v1355 = vpop.permute.xlu0 %1354
        %1358 = vset.pattern.permute.xlu0 0
        %1359 = vperm.xlu0 %1358, %v637
        %v1360 = vpop.permute.xlu0 %1359
        %1363 = vset.pattern.permute.xlu0 0
        %1364 = vperm.xlu0 %1363, %v638
        %v1365 = vpop.permute.xlu0 %1364
        %1368 = vset.pattern.permute.xlu0 0
        %1369 = vperm.xlu0 %1368, %v639
        %v1370 = vpop.permute.xlu0 %1369
        %1373 = vset.pattern.permute.xlu0 0
        %1374 = vperm.xlu0 %1373, %v640
        %v1375 = vpop.permute.xlu0 %1374
        %1378 = vset.pattern.permute.xlu0 0
        %1379 = vperm.xlu0 %1378, %v641
        %v1380 = vpop.permute.xlu0 %1379
        %1383 = vset.pattern.permute.xlu0 0
        %1384 = vperm.xlu0 %1383, %v642
        %v1385 = vpop.permute.xlu0 %1384
        %1388 = vset.pattern.permute.xlu0 0
        %1389 = vperm.xlu0 %1388, %v643
        %v1390 = vpop.permute.xlu0 %1389
        %1393 = vset.pattern.permute.xlu0 0
        %1394 = vperm.xlu0 %1393, %v644
        %v1395 = vpop.permute.xlu0 %1394
        %1398 = vset.pattern.permute.xlu0 0
        %1399 = vperm.xlu0 %1398, %v645
        %v1400 = vpop.permute.xlu0 %1399
        %1403 = vset.pattern.permute.xlu0 0
        %1404 = vperm.xlu0 %1403, %v646
        %v1405 = vpop.permute.xlu0 %1404
        %1408 = vset.pattern.permute.xlu0 0
        %1409 = vperm.xlu0 %1408, %v647
        %v1410 = vpop.permute.xlu0 %1409
        %1413 = vset.pattern.permute.xlu0 0
        %1414 = vperm.xlu0 %1413, %v648
        %v1415 = vpop.permute.xlu0 %1414
        %1418 = vset.pattern.permute.xlu0 0
        %1419 = vperm.xlu0 %1418, %v649
        %v1420 = vpop.permute.xlu0 %1419
        %1423 = vset.pattern.permute.xlu0 0
        %1424 = vperm.xlu0 %1423, %v650
        %v1425 = vpop.permute.xlu0 %1424
        %1428 = vset.pattern.permute.xlu0 0
        %1429 = vperm.xlu0 %1428, %v651
        %v1430 = vpop.permute.xlu0 %1429
        %1433 = vset.pattern.permute.xlu0 0
        %1434 = vperm.xlu0 %1433, %v652
        %v1435 = vpop.permute.xlu0 %1434
        %1438 = vset.pattern.permute.xlu0 0
        %1439 = vperm.xlu0 %1438, %v653
        %v1440 = vpop.permute.xlu0 %1439
        %1443 = vset.pattern.permute.xlu0 0
        %1444 = vperm.xlu0 %1443, %v654
        %v1445 = vpop.permute.xlu0 %1444
        %1448 = vset.pattern.permute.xlu0 0
        %1449 = vperm.xlu0 %1448, %v655
        %v1450 = vpop.permute.xlu0 %1449
        %1453 = vset.pattern.permute.xlu0 0
        %1454 = vperm.xlu0 %1453, %v656
        %v1455 = vpop.permute.xlu0 %1454
        %1458 = vset.pattern.permute.xlu0 0
        %1459 = vperm.xlu0 %1458, %v657
        %v1460 = vpop.permute.xlu0 %1459
        %1463 = vset.pattern.permute.xlu0 0
        %1464 = vperm.xlu0 %1463, %v658
        %v1465 = vpop.permute.xlu0 %1464
        %1468 = vset.pattern.permute.xlu0 0
        %1469 = vperm.xlu0 %1468, %v659
        %v1470 = vpop.permute.xlu0 %1469
        %1473 = vset.pattern.permute.xlu0 0
        %1474 = vperm.xlu0 %1473, %v660
        %v1475 = vpop.permute.xlu0 %1474
        %1478 = vset.pattern.permute.xlu0 0
        %1479 = vperm.xlu0 %1478, %v661
        %v1480 = vpop.permute.xlu0 %1479
        %1483 = vset.pattern.permute.xlu0 0
        %1484 = vperm.xlu0 %1483, %v662
        %v1485 = vpop.permute.xlu0 %1484
        %1488 = vset.pattern.permute.xlu0 0
        %1489 = vperm.xlu0 %1488, %v663
        %v1490 = vpop.permute.xlu0 %1489
        %1493 = vset.pattern.permute.xlu0 0
        %1494 = vperm.xlu0 %1493, %v664
        %v1495 = vpop.permute.xlu0 %1494
        %1498 = vset.pattern.permute.xlu0 0
        %1499 = vperm.xlu0 %1498, %v665
        %v1500 = vpop.permute.xlu0 %1499
        %1503 = vset.pattern.permute.xlu0 0
        %1504 = vperm.xlu0 %1503, %v666
        %v1505 = vpop.permute.xlu0 %1504
        %1508 = vset.pattern.permute.xlu0 0
        %1509 = vperm.xlu0 %1508, %v667
        %v1510 = vpop.permute.xlu0 %1509
        %1513 = vset.pattern.permute.xlu0 0
        %1514 = vperm.xlu0 %1513, %v668
        %v1515 = vpop.permute.xlu0 %1514
        %1518 = vset.pattern.permute.xlu0 0
        %1519 = vperm.xlu0 %1518, %v669
        %v1520 = vpop.permute.xlu0 %1519
        %1523 = vset.pattern.permute.xlu0 0
        %1524 = vperm.xlu0 %1523, %v670
        %v1525 = vpop.permute.xlu0 %1524
        %1528 = vset.pattern.permute.xlu0 0
        %1529 = vperm.xlu0 %1528, %v671
        %v1530 = vpop.permute.xlu0 %1529
        %1533 = vset.pattern.permute.xlu0 0
        %1534 = vperm.xlu0 %1533, %v672
        %v1535 = vpop.permute.xlu0 %1534
        %1538 = vset.pattern.permute.xlu0 0
        %1539 = vperm.xlu0 %1538, %v673
        %v1540 = vpop.permute.xlu0 %1539
        %1543 = vset.pattern.permute.xlu0 0
        %1544 = vperm.xlu0 %1543, %v674
        %v1545 = vpop.permute.xlu0 %1544
        %1548 = vset.pattern.permute.xlu0 0
        %1549 = vperm.xlu0 %1548, %v675
        %v1550 = vpop.permute.xlu0 %1549
        %1553 = vset.pattern.permute.xlu0 0
        %1554 = vperm.xlu0 %1553, %v676
        %v1555 = vpop.permute.xlu0 %1554
        %1558 = vset.pattern.permute.xlu0 0
        %1559 = vperm.xlu0 %1558, %v677
        %v1560 = vpop.permute.xlu0 %1559
        %1563 = vset.pattern.permute.xlu0 0
        %1564 = vperm.xlu0 %1563, %v678
        %v1565 = vpop.permute.xlu0 %1564
        %1568 = vset.pattern.permute.xlu0 0
        %1569 = vperm.xlu0 %1568, %v679
        %v1570 = vpop.permute.xlu0 %1569
        %1573 = vset.pattern.permute.xlu0 0
        %1574 = vperm.xlu0 %1573, %v680
        %v1575 = vpop.permute.xlu0 %1574
        %1578 = vset.pattern.permute.xlu0 0
        %1579 = vperm.xlu0 %1578, %v681
        %v1580 = vpop.permute.xlu0 %1579
        %1583 = vset.pattern.permute.xlu0 0
        %1584 = vperm.xlu0 %1583, %v682
        %v1585 = vpop.permute.xlu0 %1584
        %1588 = vset.pattern.permute.xlu0 0
        %1589 = vperm.xlu0 %1588, %v683
        %v1590 = vpop.permute.xlu0 %1589
        %1593 = vset.pattern.permute.xlu0 0
        %1594 = vperm.xlu0 %1593, %v684
        %v1595 = vpop.permute.xlu0 %1594
        %1598 = vset.pattern.permute.xlu0 0
        %1599 = vperm.xlu0 %1598, %v685
        %v1600 = vpop.permute.xlu0 %1599
        %1603 = vset.pattern.permute.xlu0 0
        %1604 = vperm.xlu0 %1603, %v686
        %v1605 = vpop.permute.xlu0 %1604
        %1608 = vset.pattern.permute.xlu0 0
        %1609 = vperm.xlu0 %1608, %v687
        %v1610 = vpop.permute.xlu0 %1609
        %1613 = vset.pattern.permute.xlu0 0
        %1614 = vperm.xlu0 %1613, %v688
        %v1615 = vpop.permute.xlu0 %1614
        %1618 = vset.pattern.permute.xlu0 0
        %1619 = vperm.xlu0 %1618, %v689
        %v1620 = vpop.permute.xlu0 %1619
        %1623 = vset.pattern.permute.xlu0 0
        %1624 = vperm.xlu0 %1623, %v690
        %v1625 = vpop.permute.xlu0 %1624
        %1628 = vset.pattern.permute.xlu0 0
        %1629 = vperm.xlu0 %1628, %v691
        %v1630 = vpop.permute.xlu0 %1629
        %1633 = vset.pattern.permute.xlu0 0
        %1634 = vperm.xlu0 %1633, %v692
        %v1635 = vpop.permute.xlu0 %1634
        %1638 = vset.pattern.permute.xlu0 0
        %1639 = vperm.xlu0 %1638, %v693
        %v1640 = vpop.permute.xlu0 %1639
        %1643 = vset.pattern.permute.xlu0 0
        %1644 = vperm.xlu0 %1643, %v694
        %v1645 = vpop.permute.xlu0 %1644
        %1648 = vset.pattern.permute.xlu0 0
        %1649 = vperm.xlu0 %1648, %v695
        %v1650 = vpop.permute.xlu0 %1649
        %1653 = vset.pattern.permute.xlu0 0
        %1654 = vperm.xlu0 %1653, %v696
        %v1655 = vpop.permute.xlu0 %1654
        %1658 = vset.pattern.permute.xlu0 0
        %1659 = vperm.xlu0 %1658, %v697
        %v1660 = vpop.permute.xlu0 %1659
        %1663 = vset.pattern.permute.xlu0 0
        %1664 = vperm.xlu0 %1663, %v698
        %v1665 = vpop.permute.xlu0 %1664
        %1668 = vset.pattern.permute.xlu0 0
        %1669 = vperm.xlu0 %1668, %v699
        %v1670 = vpop.permute.xlu0 %1669
        %1673 = vset.pattern.permute.xlu0 0
        %1674 = vperm.xlu0 %1673, %v700
        %v1675 = vpop.permute.xlu0 %1674
        %1678 = vset.pattern.permute.xlu0 0
        %1679 = vperm.xlu0 %1678, %v701
        %v1680 = vpop.permute.xlu0 %1679
        %1683 = vset.pattern.permute.xlu0 0
        %1684 = vperm.xlu0 %1683, %v702
        %v1685 = vpop.permute.xlu0 %1684
        %1688 = vset.pattern.permute.xlu0 0
        %1689 = vperm.xlu0 %1688, %v703
        %v1690 = vpop.permute.xlu0 %1689
        %1693 = vset.pattern.permute.xlu0 0
        %1694 = vperm.xlu0 %1693, %v704
        %v1695 = vpop.permute.xlu0 %1694
        %1698 = vset.pattern.permute.xlu0 0
        %1699 = vperm.xlu0 %1698, %v705
        %v1700 = vpop.permute.xlu0 %1699
        %1703 = vset.pattern.permute.xlu0 0
        %1704 = vperm.xlu0 %1703, %v706
        %v1705 = vpop.permute.xlu0 %1704
        %1708 = vset.pattern.permute.xlu0 0
        %1709 = vperm.xlu0 %1708, %v707
        %v1710 = vpop.permute.xlu0 %1709
        %1713 = vset.pattern.permute.xlu0 0
        %1714 = vperm.xlu0 %1713, %v708
        %v1715 = vpop.permute.xlu0 %1714
        %1718 = vset.pattern.permute.xlu0 0
        %1719 = vperm.xlu0 %1718, %v709
        %v1720 = vpop.permute.xlu0 %1719
        %1723 = vset.pattern.permute.xlu0 0
        %1724 = vperm.xlu0 %1723, %v710
        %v1725 = vpop.permute.xlu0 %1724
        %1728 = vset.pattern.permute.xlu0 0
        %1729 = vperm.xlu0 %1728, %v711
        %v1730 = vpop.permute.xlu0 %1729
        %1733 = vset.pattern.permute.xlu0 0
        %1734 = vperm.xlu0 %1733, %v712
        %v1735 = vpop.permute.xlu0 %1734
        %1738 = vset.pattern.permute.xlu0 0
        %1739 = vperm.xlu0 %1738, %v713
        %v1740 = vpop.permute.xlu0 %1739
        %1743 = vset.pattern.permute.xlu0 0
        %1744 = vperm.xlu0 %1743, %v714
        %v1745 = vpop.permute.xlu0 %1744
        %1748 = vset.pattern.permute.xlu0 0
        %1749 = vperm.xlu0 %1748, %v715
        %v1750 = vpop.permute.xlu0 %1749
        %1753 = vset.pattern.permute.xlu0 0
        %1754 = vperm.xlu0 %1753, %v716
        %v1755 = vpop.permute.xlu0 %1754
        %1758 = vset.pattern.permute.xlu0 0
        %1759 = vperm.xlu0 %1758, %v717
        %v1760 = vpop.permute.xlu0 %1759
        %1763 = vset.pattern.permute.xlu0 0
        %1764 = vperm.xlu0 %1763, %v718
        %v1765 = vpop.permute.xlu0 %1764
        %1768 = vset.pattern.permute.xlu0 0
        %1769 = vperm.xlu0 %1768, %v719
        %v1770 = vpop.permute.xlu0 %1769
        %1773 = vset.pattern.permute.xlu0 0
        %1774 = vperm.xlu0 %1773, %v720
        %v1775 = vpop.permute.xlu0 %1774
        %1778 = vset.pattern.permute.xlu0 0
        %1779 = vperm.xlu0 %1778, %v721
        %v1780 = vpop.permute.xlu0 %1779
        %1783 = vset.pattern.permute.xlu0 0
        %1784 = vperm.xlu0 %1783, %v722
        %v1785 = vpop.permute.xlu0 %1784
        %1788 = vset.pattern.permute.xlu0 0
        %1789 = vperm.xlu0 %1788, %v723
        %v1790 = vpop.permute.xlu0 %1789
        %1793 = vset.pattern.permute.xlu0 0
        %1794 = vperm.xlu0 %1793, %v724
        %v1795 = vpop.permute.xlu0 %1794
        %1798 = vset.pattern.permute.xlu0 0
        %1799 = vperm.xlu0 %1798, %v725
        %v1800 = vpop.permute.xlu0 %1799
        %1803 = vset.pattern.permute.xlu0 0
        %1804 = vperm.xlu0 %1803, %v726
        %v1805 = vpop.permute.xlu0 %1804
        %1808 = vset.pattern.permute.xlu0 0
        %1809 = vperm.xlu0 %1808, %v727
        %v1810 = vpop.permute.xlu0 %1809
        %1813 = vset.pattern.permute.xlu0 0
        %1814 = vperm.xlu0 %1813, %v728
        %v1815 = vpop.permute.xlu0 %1814
        %1818 = vset.pattern.permute.xlu0 0
        %1819 = vperm.xlu0 %1818, %v729
        %v1820 = vpop.permute.xlu0 %1819
        %1823 = vset.pattern.permute.xlu0 0
        %1824 = vperm.xlu0 %1823, %v730
        %v1825 = vpop.permute.xlu0 %1824
        %1828 = vset.pattern.permute.xlu0 0
        %1829 = vperm.xlu0 %1828, %v731
        %v1830 = vpop.permute.xlu0 %1829
        %1833 = vset.pattern.permute.xlu0 0
        %1834 = vperm.xlu0 %1833, %v732
        %v1835 = vpop.permute.xlu0 %1834
        %1838 = vset.pattern.permute.xlu0 0
        %1839 = vperm.xlu0 %1838, %v733
        %v1840 = vpop.permute.xlu0 %1839
        %1843 = vset.pattern.permute.xlu0 0
        %1844 = vperm.xlu0 %1843, %v734
        %v1845 = vpop.permute.xlu0 %1844
        %1848 = vset.pattern.permute.xlu0 0
        %1849 = vperm.xlu0 %1848, %v735
        %v1850 = vpop.permute.xlu0 %1849
        %1853 = vset.pattern.permute.xlu0 0
        %1854 = vperm.xlu0 %1853, %v736
        %v1855 = vpop.permute.xlu0 %1854
        %1858 = vset.pattern.permute.xlu0 0
        %1859 = vperm.xlu0 %1858, %v737
        %v1860 = vpop.permute.xlu0 %1859
        %1863 = vset.pattern.permute.xlu0 0
        %1864 = vperm.xlu0 %1863, %v738
        %v1865 = vpop.permute.xlu0 %1864
        %1868 = vset.pattern.permute.xlu0 0
        %1869 = vperm.xlu0 %1868, %v739
        %v1870 = vpop.permute.xlu0 %1869
        %1873 = vset.pattern.permute.xlu0 0
        %1874 = vperm.xlu0 %1873, %v740
        %v1875 = vpop.permute.xlu0 %1874
        %1878 = vset.pattern.permute.xlu0 0
        %1879 = vperm.xlu0 %1878, %v741
        %v1880 = vpop.permute.xlu0 %1879
        %1883 = vset.pattern.permute.xlu0 0
        %1884 = vperm.xlu0 %1883, %v742
        %v1885 = vpop.permute.xlu0 %1884
        %1888 = vset.pattern.permute.xlu0 0
        %1889 = vperm.xlu0 %1888, %v743
        %v1890 = vpop.permute.xlu0 %1889
        %1893 = vset.pattern.permute.xlu0 0
        %1894 = vperm.xlu0 %1893, %v744
        %v1895 = vpop.permute.xlu0 %1894
        %1898 = vset.pattern.permute.xlu0 0
        %1899 = vperm.xlu0 %1898, %v745
        %v1900 = vpop.permute.xlu0 %1899
        %1903 = vset.pattern.permute.xlu0 0
        %1904 = vperm.xlu0 %1903, %v746
        %v1905 = vpop.permute.xlu0 %1904
        %1908 = vset.pattern.permute.xlu0 0
        %1909 = vperm.xlu0 %1908, %v747
        %v1910 = vpop.permute.xlu0 %1909
        %1913 = vset.pattern.permute.xlu0 0
        %1914 = vperm.xlu0 %1913, %v748
        %v1915 = vpop.permute.xlu0 %1914
        %1918 = vset.pattern.permute.xlu0 0
        %1919 = vperm.xlu0 %1918, %v749
        %v1920 = vpop.permute.xlu0 %1919
        %1923 = vset.pattern.permute.xlu0 0
        %1924 = vperm.xlu0 %1923, %v750
        %v1925 = vpop.permute.xlu0 %1924
        %1928 = vset.pattern.permute.xlu0 0
        %1929 = vperm.xlu0 %1928, %v751
        %v1930 = vpop.permute.xlu0 %1929
        %1933 = vset.pattern.permute.xlu0 0
        %1934 = vperm.xlu0 %1933, %v752
        %v1935 = vpop.permute.xlu0 %1934
        %1938 = vset.pattern.permute.xlu0 0
        %1939 = vperm.xlu0 %1938, %v753
        %v1940 = vpop.permute.xlu0 %1939
        %1943 = vset.pattern.permute.xlu0 0
        %1944 = vperm.xlu0 %1943, %v754
        %v1945 = vpop.permute.xlu0 %1944
        %1948 = vset.pattern.permute.xlu0 0
        %1949 = vperm.xlu0 %1948, %v755
        %v1950 = vpop.permute.xlu0 %1949
        %1953 = vset.pattern.permute.xlu0 0
        %1954 = vperm.xlu0 %1953, %v756
        %v1955 = vpop.permute.xlu0 %1954
        %1958 = vset.pattern.permute.xlu0 0
        %1959 = vperm.xlu0 %1958, %v757
        %v1960 = vpop.permute.xlu0 %1959
        %1963 = vset.pattern.permute.xlu0 0
        %1964 = vperm.xlu0 %1963, %v758
        %v1965 = vpop.permute.xlu0 %1964
        %1968 = vset.pattern.permute.xlu0 0
        %1969 = vperm.xlu0 %1968, %v759
        %v1970 = vpop.permute.xlu0 %1969
        %1973 = vset.pattern.permute.xlu0 0
        %1974 = vperm.xlu0 %1973, %v760
        %v1975 = vpop.permute.xlu0 %1974
        %1978 = vset.pattern.permute.xlu0 0
        %1979 = vperm.xlu0 %1978, %v761
        %v1980 = vpop.permute.xlu0 %1979
        %1983 = vset.pattern.permute.xlu0 0
        %1984 = vperm.xlu0 %1983, %v762
        %v1985 = vpop.permute.xlu0 %1984
        %1988 = vset.pattern.permute.xlu0 0
        %1989 = vperm.xlu0 %1988, %v763
        %v1990 = vpop.permute.xlu0 %1989
        %1993 = vset.pattern.permute.xlu0 0
        %1994 = vperm.xlu0 %1993, %v764
        %v1995 = vpop.permute.xlu0 %1994
        %1998 = vset.pattern.permute.xlu0 0
        %1999 = vperm.xlu0 %1998, %v765
        %v2000 = vpop.permute.xlu0 %1999
        %2003 = vset.pattern.permute.xlu0 0
        %2004 = vperm.xlu0 %2003, %v766
        %v2005 = vpop.permute.xlu0 %2004
        %2008 = vset.pattern.permute.xlu0 0
        %2009 = vperm.xlu0 %2008, %v767
        %v2010 = vpop.permute.xlu0 %2009
        %2013 = vset.pattern.permute.xlu0 0
        %2014 = vperm.xlu0 %2013, %v768
        %v2015 = vpop.permute.xlu0 %2014
        %2018 = vset.pattern.permute.xlu0 0
        %2019 = vperm.xlu0 %2018, %v769
        %v2020 = vpop.permute.xlu0 %2019
        %2023 = vset.pattern.permute.xlu0 0
        %2024 = vperm.xlu0 %2023, %v770
        %v2025 = vpop.permute.xlu0 %2024
        %2028 = vset.pattern.permute.xlu0 0
        %2029 = vperm.xlu0 %2028, %v771
        %v2030 = vpop.permute.xlu0 %2029
        %2033 = vset.pattern.permute.xlu0 0
        %2034 = vperm.xlu0 %2033, %v772
        %v2035 = vpop.permute.xlu0 %2034
        %2038 = vset.pattern.permute.xlu0 0
        %2039 = vperm.xlu0 %2038, %v773
        %v2040 = vpop.permute.xlu0 %2039
        %2043 = vset.pattern.permute.xlu0 0
        %2044 = vperm.xlu0 %2043, %v774
        %v2045 = vpop.permute.xlu0 %2044
        %2048 = vset.pattern.permute.xlu0 0
        %2049 = vperm.xlu0 %2048, %v775
        %v2050 = vpop.permute.xlu0 %2049
        %2053 = vset.pattern.permute.xlu0 0
        %2054 = vperm.xlu0 %2053, %v776
        %v2055 = vpop.permute.xlu0 %2054
        %v2057 = vmul.f32 %v265, %v780
        %v2058 = vmul.f32 %v266, %v785
        %v2059 = vmul.f32 %v267, %v790
        %v2060 = vmul.f32 %v268, %v795
        %v2061 = vmul.f32 %v269, %v800
        %v2062 = vmul.f32 %v270, %v805
        %v2063 = vmul.f32 %v271, %v810
        %v2064 = vmul.f32 %v272, %v815
        %v2065 = vmul.f32 %v273, %v820
        %v2066 = vmul.f32 %v274, %v825
        %v2067 = vmul.f32 %v275, %v830
        %v2068 = vmul.f32 %v276, %v835
        %v2069 = vmul.f32 %v277, %v840
        %v2070 = vmul.f32 %v278, %v845
        %v2071 = vmul.f32 %v279, %v850
        %v2072 = vmul.f32 %v280, %v855
        %v2073 = vmul.f32 %v281, %v860
        %v2074 = vmul.f32 %v282, %v865
        %v2075 = vmul.f32 %v283, %v870
        %v2076 = vmul.f32 %v284, %v875
        %v2077 = vmul.f32 %v285, %v880
        %v2078 = vmul.f32 %v286, %v885
        %v2079 = vmul.f32 %v287, %v890
        %v2080 = vmul.f32 %v288, %v895
        %v2081 = vmul.f32 %v289, %v900
        %v2082 = vmul.f32 %v290, %v905
        %v2083 = vmul.f32 %v291, %v910
        %v2084 = vmul.f32 %v292, %v915
        %v2085 = vmul.f32 %v293, %v920
        %v2086 = vmul.f32 %v294, %v925
        %v2087 = vmul.f32 %v295, %v930
        %v2088 = vmul.f32 %v296, %v935
        %v2089 = vmul.f32 %v297, %v940
        %v2090 = vmul.f32 %v298, %v945
        %v2091 = vmul.f32 %v299, %v950
        %v2092 = vmul.f32 %v300, %v955
        %v2093 = vmul.f32 %v301, %v960
        %v2094 = vmul.f32 %v302, %v965
        %v2095 = vmul.f32 %v303, %v970
        %v2096 = vmul.f32 %v304, %v975
        %v2097 = vmul.f32 %v305, %v980
        %v2098 = vmul.f32 %v306, %v985
        %v2099 = vmul.f32 %v307, %v990
        %v2100 = vmul.f32 %v308, %v995
        %v2101 = vmul.f32 %v309, %v1000
        %v2102 = vmul.f32 %v310, %v1005
        %v2103 = vmul.f32 %v311, %v1010
        %v2104 = vmul.f32 %v312, %v1015
        %v2105 = vmul.f32 %v313, %v1020
        %v2106 = vmul.f32 %v314, %v1025
        %v2107 = vmul.f32 %v315, %v1030
        %v2108 = vmul.f32 %v316, %v1035
        %v2109 = vmul.f32 %v317, %v1040
        %v2110 = vmul.f32 %v318, %v1045
        %v2111 = vmul.f32 %v319, %v1050
        %v2112 = vmul.f32 %v320, %v1055
        %v2113 = vmul.f32 %v321, %v1060
        %v2114 = vmul.f32 %v322, %v1065
        %v2115 = vmul.f32 %v323, %v1070
        %v2116 = vmul.f32 %v324, %v1075
        %v2117 = vmul.f32 %v325, %v1080
        %v2118 = vmul.f32 %v326, %v1085
        %v2119 = vmul.f32 %v327, %v1090
        %v2120 = vmul.f32 %v328, %v1095
        %v2121 = vmul.f32 %v329, %v1100
        %v2122 = vmul.f32 %v330, %v1105
        %v2123 = vmul.f32 %v331, %v1110
        %v2124 = vmul.f32 %v332, %v1115
        %v2125 = vmul.f32 %v333, %v1120
        %v2126 = vmul.f32 %v334, %v1125
        %v2127 = vmul.f32 %v335, %v1130
        %v2128 = vmul.f32 %v336, %v1135
        %v2129 = vmul.f32 %v337, %v1140
        %v2130 = vmul.f32 %v338, %v1145
        %v2131 = vmul.f32 %v339, %v1150
        %v2132 = vmul.f32 %v340, %v1155
        %v2133 = vmul.f32 %v341, %v1160
        %v2134 = vmul.f32 %v342, %v1165
        %v2135 = vmul.f32 %v343, %v1170
        %v2136 = vmul.f32 %v344, %v1175
        %v2137 = vmul.f32 %v345, %v1180
        %v2138 = vmul.f32 %v346, %v1185
        %v2139 = vmul.f32 %v347, %v1190
        %v2140 = vmul.f32 %v348, %v1195
        %v2141 = vmul.f32 %v349, %v1200
        %v2142 = vmul.f32 %v350, %v1205
        %v2143 = vmul.f32 %v351, %v1210
        %v2144 = vmul.f32 %v352, %v1215
        %v2145 = vmul.f32 %v353, %v1220
        %v2146 = vmul.f32 %v354, %v1225
        %v2147 = vmul.f32 %v355, %v1230
        %v2148 = vmul.f32 %v356, %v1235
        %v2149 = vmul.f32 %v357, %v1240
        %v2150 = vmul.f32 %v358, %v1245
        %v2151 = vmul.f32 %v359, %v1250
        %v2152 = vmul.f32 %v360, %v1255
        %v2153 = vmul.f32 %v361, %v1260
        %v2154 = vmul.f32 %v362, %v1265
        %v2155 = vmul.f32 %v363, %v1270
        %v2156 = vmul.f32 %v364, %v1275
        %v2157 = vmul.f32 %v365, %v1280
        %v2158 = vmul.f32 %v366, %v1285
        %v2159 = vmul.f32 %v367, %v1290
        %v2160 = vmul.f32 %v368, %v1295
        %v2161 = vmul.f32 %v369, %v1300
        %v2162 = vmul.f32 %v370, %v1305
        %v2163 = vmul.f32 %v371, %v1310
        %v2164 = vmul.f32 %v372, %v1315
        %v2165 = vmul.f32 %v373, %v1320
        %v2166 = vmul.f32 %v374, %v1325
        %v2167 = vmul.f32 %v375, %v1330
        %v2168 = vmul.f32 %v376, %v1335
        %v2169 = vmul.f32 %v377, %v1340
        %v2170 = vmul.f32 %v378, %v1345
        %v2171 = vmul.f32 %v379, %v1350
        %v2172 = vmul.f32 %v380, %v1355
        %v2173 = vmul.f32 %v381, %v1360
        %v2174 = vmul.f32 %v382, %v1365
        %v2175 = vmul.f32 %v383, %v1370
        %v2176 = vmul.f32 %v384, %v1375
        %v2177 = vmul.f32 %v385, %v1380
        %v2178 = vmul.f32 %v386, %v1385
        %v2179 = vmul.f32 %v387, %v1390
        %v2180 = vmul.f32 %v388, %v1395
        %v2181 = vmul.f32 %v389, %v1400
        %v2182 = vmul.f32 %v390, %v1405
        %v2183 = vmul.f32 %v391, %v1410
        %v2184 = vmul.f32 %v392, %v1415
        %v2185 = vmul.f32 %v393, %v1420
        %v2186 = vmul.f32 %v394, %v1425
        %v2187 = vmul.f32 %v395, %v1430
        %v2188 = vmul.f32 %v396, %v1435
        %v2189 = vmul.f32 %v397, %v1440
        %v2190 = vmul.f32 %v398, %v1445
        %v2191 = vmul.f32 %v399, %v1450
        %v2192 = vmul.f32 %v400, %v1455
        %v2193 = vmul.f32 %v401, %v1460
        %v2194 = vmul.f32 %v402, %v1465
        %v2195 = vmul.f32 %v403, %v1470
        %v2196 = vmul.f32 %v404, %v1475
        %v2197 = vmul.f32 %v405, %v1480
        %v2198 = vmul.f32 %v406, %v1485
        %v2199 = vmul.f32 %v407, %v1490
        %v2200 = vmul.f32 %v408, %v1495
        %v2201 = vmul.f32 %v409, %v1500
        %v2202 = vmul.f32 %v410, %v1505
        %v2203 = vmul.f32 %v411, %v1510
        %v2204 = vmul.f32 %v412, %v1515
        %v2205 = vmul.f32 %v413, %v1520
        %v2206 = vmul.f32 %v414, %v1525
        %v2207 = vmul.f32 %v415, %v1530
        %v2208 = vmul.f32 %v416, %v1535
        %v2209 = vmul.f32 %v417, %v1540
        %v2210 = vmul.f32 %v418, %v1545
        %v2211 = vmul.f32 %v419, %v1550
        %v2212 = vmul.f32 %v420, %v1555
        %v2213 = vmul.f32 %v421, %v1560
        %v2214 = vmul.f32 %v422, %v1565
        %v2215 = vmul.f32 %v423, %v1570
        %v2216 = vmul.f32 %v424, %v1575
        %v2217 = vmul.f32 %v425, %v1580
        %v2218 = vmul.f32 %v426, %v1585
        %v2219 = vmul.f32 %v427, %v1590
        %v2220 = vmul.f32 %v428, %v1595
        %v2221 = vmul.f32 %v429, %v1600
        %v2222 = vmul.f32 %v430, %v1605
        %v2223 = vmul.f32 %v431, %v1610
        %v2224 = vmul.f32 %v432, %v1615
        %v2225 = vmul.f32 %v433, %v1620
        %v2226 = vmul.f32 %v434, %v1625
        %v2227 = vmul.f32 %v435, %v1630
        %v2228 = vmul.f32 %v436, %v1635
        %v2229 = vmul.f32 %v437, %v1640
        %v2230 = vmul.f32 %v438, %v1645
        %v2231 = vmul.f32 %v439, %v1650
        %v2232 = vmul.f32 %v440, %v1655
        %v2233 = vmul.f32 %v441, %v1660
        %v2234 = vmul.f32 %v442, %v1665
        %v2235 = vmul.f32 %v443, %v1670
        %v2236 = vmul.f32 %v444, %v1675
        %v2237 = vmul.f32 %v445, %v1680
        %v2238 = vmul.f32 %v446, %v1685
        %v2239 = vmul.f32 %v447, %v1690
        %v2240 = vmul.f32 %v448, %v1695
        %v2241 = vmul.f32 %v449, %v1700
        %v2242 = vmul.f32 %v450, %v1705
        %v2243 = vmul.f32 %v451, %v1710
        %v2244 = vmul.f32 %v452, %v1715
        %v2245 = vmul.f32 %v453, %v1720
        %v2246 = vmul.f32 %v454, %v1725
        %v2247 = vmul.f32 %v455, %v1730
        %v2248 = vmul.f32 %v456, %v1735
        %v2249 = vmul.f32 %v457, %v1740
        %v2250 = vmul.f32 %v458, %v1745
        %v2251 = vmul.f32 %v459, %v1750
        %v2252 = vmul.f32 %v460, %v1755
        %v2253 = vmul.f32 %v461, %v1760
        %v2254 = vmul.f32 %v462, %v1765
        %v2255 = vmul.f32 %v463, %v1770
        %v2256 = vmul.f32 %v464, %v1775
        %v2257 = vmul.f32 %v465, %v1780
        %v2258 = vmul.f32 %v466, %v1785
        %v2259 = vmul.f32 %v467, %v1790
        %v2260 = vmul.f32 %v468, %v1795
        %v2261 = vmul.f32 %v469, %v1800
        %v2262 = vmul.f32 %v470, %v1805
        %v2263 = vmul.f32 %v471, %v1810
        %v2264 = vmul.f32 %v472, %v1815
        %v2265 = vmul.f32 %v473, %v1820
        %v2266 = vmul.f32 %v474, %v1825
        %v2267 = vmul.f32 %v475, %v1830
        %v2268 = vmul.f32 %v476, %v1835
        %v2269 = vmul.f32 %v477, %v1840
        %v2270 = vmul.f32 %v478, %v1845
        %v2271 = vmul.f32 %v479, %v1850
        %v2272 = vmul.f32 %v480, %v1855
        %v2273 = vmul.f32 %v481, %v1860
        %v2274 = vmul.f32 %v482, %v1865
        %v2275 = vmul.f32 %v483, %v1870
        %v2276 = vmul.f32 %v484, %v1875
        %v2277 = vmul.f32 %v485, %v1880
        %v2278 = vmul.f32 %v486, %v1885
        %v2279 = vmul.f32 %v487, %v1890
        %v2280 = vmul.f32 %v488, %v1895
        %v2281 = vmul.f32 %v489, %v1900
        %v2282 = vmul.f32 %v490, %v1905
        %v2283 = vmul.f32 %v491, %v1910
        %v2284 = vmul.f32 %v492, %v1915
        %v2285 = vmul.f32 %v493, %v1920
        %v2286 = vmul.f32 %v494, %v1925
        %v2287 = vmul.f32 %v495, %v1930
        %v2288 = vmul.f32 %v496, %v1935
        %v2289 = vmul.f32 %v497, %v1940
        %v2290 = vmul.f32 %v498, %v1945
        %v2291 = vmul.f32 %v499, %v1950
        %v2292 = vmul.f32 %v500, %v1955
        %v2293 = vmul.f32 %v501, %v1960
        %v2294 = vmul.f32 %v502, %v1965
        %v2295 = vmul.f32 %v503, %v1970
        %v2296 = vmul.f32 %v504, %v1975
        %v2297 = vmul.f32 %v505, %v1980
        %v2298 = vmul.f32 %v506, %v1985
        %v2299 = vmul.f32 %v507, %v1990
        %v2300 = vmul.f32 %v508, %v1995
        %v2301 = vmul.f32 %v509, %v2000
        %v2302 = vmul.f32 %v510, %v2005
        %v2303 = vmul.f32 %v511, %v2010
        %v2304 = vmul.f32 %v512, %v2015
        %v2305 = vmul.f32 %v513, %v2020
        %v2306 = vmul.f32 %v514, %v2025
        %v2307 = vmul.f32 %v515, %v2030
        %v2308 = vmul.f32 %v516, %v2035
        %v2309 = vmul.f32 %v517, %v2040
        %v2310 = vmul.f32 %v518, %v2045
        %v2311 = vmul.f32 %v519, %v2050
        %v2312 = vmul.f32 %v520, %v2055
        %v2313 = vld [vmem:[#allocation2] sm:$0xff]
        %v2314 = vadd.f32 %v2057, %v2058
        %v2315 = vadd.f32 %v2314, %v2059
        %v2316 = vadd.f32 %v2315, %v2060
        %v2317 = vadd.f32 %v2316, %v2061
        %v2318 = vadd.f32 %v2317, %v2062
        %v2319 = vadd.f32 %v2318, %v2063
        %v2320 = vadd.f32 %v2319, %v2064
        %v2321 = vadd.f32 %v2320, %v2065
        %v2322 = vadd.f32 %v2321, %v2066
        %v2323 = vadd.f32 %v2322, %v2067
        %v2324 = vadd.f32 %v2323, %v2068
        %v2325 = vadd.f32 %v2324, %v2069
        %v2326 = vadd.f32 %v2325, %v2070
        %v2327 = vadd.f32 %v2326, %v2071
        %v2328 = vadd.f32 %v2327, %v2072
        %v2329 = vadd.f32 %v2328, %v2073
        %v2330 = vadd.f32 %v2329, %v2074
        %v2331 = vadd.f32 %v2330, %v2075
        %v2332 = vadd.f32 %v2331, %v2076
        %v2333 = vadd.f32 %v2332, %v2077
        %v2334 = vadd.f32 %v2333, %v2078
        %v2335 = vadd.f32 %v2334, %v2079
        %v2336 = vadd.f32 %v2335, %v2080
        %v2337 = vadd.f32 %v2336, %v2081
        %v2338 = vadd.f32 %v2337, %v2082
        %v2339 = vadd.f32 %v2338, %v2083
        %v2340 = vadd.f32 %v2339, %v2084
        %v2341 = vadd.f32 %v2340, %v2085
        %v2342 = vadd.f32 %v2341, %v2086
        %v2343 = vadd.f32 %v2342, %v2087
        %v2344 = vadd.f32 %v2343, %v2088
        %v2345 = vrot.slane %v2344, 4
        %v2346 = vadd.f32 %v2344, %v2345
        %v2347 = vrot.slane %v2346, 2
        %v2348 = vadd.f32 %v2346, %v2347
        %v2349 = vrot.slane %v2348, 1
        %v2350 = vadd.f32 %v2348, %v2349
        %v2351 = vadd.f32 %v2089, %v2090
        %v2352 = vadd.f32 %v2351, %v2091
        %v2353 = vadd.f32 %v2352, %v2092
        %v2354 = vadd.f32 %v2353, %v2093
        %v2355 = vadd.f32 %v2354, %v2094
        %v2356 = vadd.f32 %v2355, %v2095
        %v2357 = vadd.f32 %v2356, %v2096
        %v2358 = vadd.f32 %v2357, %v2097
        %v2359 = vadd.f32 %v2358, %v2098
        %v2360 = vadd.f32 %v2359, %v2099
        %v2361 = vadd.f32 %v2360, %v2100
        %v2362 = vadd.f32 %v2361, %v2101
        %v2363 = vadd.f32 %v2362, %v2102
        %v2364 = vadd.f32 %v2363, %v2103
        %v2365 = vadd.f32 %v2364, %v2104
        %v2366 = vadd.f32 %v2365, %v2105
        %v2367 = vadd.f32 %v2366, %v2106
        %v2368 = vadd.f32 %v2367, %v2107
        %v2369 = vadd.f32 %v2368, %v2108
        %v2370 = vadd.f32 %v2369, %v2109
        %v2371 = vadd.f32 %v2370, %v2110
        %v2372 = vadd.f32 %v2371, %v2111
        %v2373 = vadd.f32 %v2372, %v2112
        %v2374 = vadd.f32 %v2373, %v2113
        %v2375 = vadd.f32 %v2374, %v2114
        %v2376 = vadd.f32 %v2375, %v2115
        %v2377 = vadd.f32 %v2376, %v2116
        %v2378 = vadd.f32 %v2377, %v2117
        %v2379 = vadd.f32 %v2378, %v2118
        %v2380 = vadd.f32 %v2379, %v2119
        %v2381 = vadd.f32 %v2380, %v2120
        %v2382 = vrot.slane %v2381, 4
        %v2383 = vadd.f32 %v2381, %v2382
        %v2384 = vrot.slane %v2383, 2
        %v2385 = vadd.f32 %v2383, %v2384
        %v2386 = vrot.slane %v2385, 1
        %v2387 = vadd.f32 %v2385, %v2386
        %v2388 = vadd.f32 %v2121, %v2122
        %v2389 = vadd.f32 %v2388, %v2123
        %v2390 = vadd.f32 %v2389, %v2124
        %v2391 = vadd.f32 %v2390, %v2125
        %v2392 = vadd.f32 %v2391, %v2126
        %v2393 = vadd.f32 %v2392, %v2127
        %v2394 = vadd.f32 %v2393, %v2128
        %v2395 = vadd.f32 %v2394, %v2129
        %v2396 = vadd.f32 %v2395, %v2130
        %v2397 = vadd.f32 %v2396, %v2131
        %v2398 = vadd.f32 %v2397, %v2132
        %v2399 = vadd.f32 %v2398, %v2133
        %v2400 = vadd.f32 %v2399, %v2134
        %v2401 = vadd.f32 %v2400, %v2135
        %v2402 = vadd.f32 %v2401, %v2136
        %v2403 = vadd.f32 %v2402, %v2137
        %v2404 = vadd.f32 %v2403, %v2138
        %v2405 = vadd.f32 %v2404, %v2139
        %v2406 = vadd.f32 %v2405, %v2140
        %v2407 = vadd.f32 %v2406, %v2141
        %v2408 = vadd.f32 %v2407, %v2142
        %v2409 = vadd.f32 %v2408, %v2143
        %v2410 = vadd.f32 %v2409, %v2144
        %v2411 = vadd.f32 %v2410, %v2145
        %v2412 = vadd.f32 %v2411, %v2146
        %v2413 = vadd.f32 %v2412, %v2147
        %v2414 = vadd.f32 %v2413, %v2148
        %v2415 = vadd.f32 %v2414, %v2149
        %v2416 = vadd.f32 %v2415, %v2150
        %v2417 = vadd.f32 %v2416, %v2151
        %v2418 = vadd.f32 %v2417, %v2152
        %v2419 = vrot.slane %v2418, 4
        %v2420 = vadd.f32 %v2418, %v2419
        %v2421 = vrot.slane %v2420, 2
        %v2422 = vadd.f32 %v2420, %v2421
        %v2423 = vrot.slane %v2422, 1
        %v2424 = vadd.f32 %v2422, %v2423
        %v2425 = vadd.f32 %v2153, %v2154
        %v2426 = vadd.f32 %v2425, %v2155
        %v2427 = vadd.f32 %v2426, %v2156
        %v2428 = vadd.f32 %v2427, %v2157
        %v2429 = vadd.f32 %v2428, %v2158
        %v2430 = vadd.f32 %v2429, %v2159
        %v2431 = vadd.f32 %v2430, %v2160
        %v2432 = vadd.f32 %v2431, %v2161
        %v2433 = vadd.f32 %v2432, %v2162
        %v2434 = vadd.f32 %v2433, %v2163
        %v2435 = vadd.f32 %v2434, %v2164
        %v2436 = vadd.f32 %v2435, %v2165
        %v2437 = vadd.f32 %v2436, %v2166
        %v2438 = vadd.f32 %v2437, %v2167
        %v2439 = vadd.f32 %v2438, %v2168
        %v2440 = vadd.f32 %v2439, %v2169
        %v2441 = vadd.f32 %v2440, %v2170
        %v2442 = vadd.f32 %v2441, %v2171
        %v2443 = vadd.f32 %v2442, %v2172
        %v2444 = vadd.f32 %v2443, %v2173
        %v2445 = vadd.f32 %v2444, %v2174
        %v2446 = vadd.f32 %v2445, %v2175
        %v2447 = vadd.f32 %v2446, %v2176
        %v2448 = vadd.f32 %v2447, %v2177
        %v2449 = vadd.f32 %v2448, %v2178
        %v2450 = vadd.f32 %v2449, %v2179
        %v2451 = vadd.f32 %v2450, %v2180
        %v2452 = vadd.f32 %v2451, %v2181
        %v2453 = vadd.f32 %v2452, %v2182
        %v2454 = vadd.f32 %v2453, %v2183
        %v2455 = vadd.f32 %v2454, %v2184
        %v2456 = vrot.slane %v2455, 4
        %v2457 = vadd.f32 %v2455, %v2456
        %v2458 = vrot.slane %v2457, 2
        %v2459 = vadd.f32 %v2457, %v2458
        %v2460 = vrot.slane %v2459, 1
        %v2461 = vadd.f32 %v2459, %v2460
        %v2462 = vadd.f32 %v2185, %v2186
        %v2463 = vadd.f32 %v2462, %v2187
        %v2464 = vadd.f32 %v2463, %v2188
        %v2465 = vadd.f32 %v2464, %v2189
        %v2466 = vadd.f32 %v2465, %v2190
        %v2467 = vadd.f32 %v2466, %v2191
        %v2468 = vadd.f32 %v2467, %v2192
        %v2469 = vadd.f32 %v2468, %v2193
        %v2470 = vadd.f32 %v2469, %v2194
        %v2471 = vadd.f32 %v2470, %v2195
        %v2472 = vadd.f32 %v2471, %v2196
        %v2473 = vadd.f32 %v2472, %v2197
        %v2474 = vadd.f32 %v2473, %v2198
        %v2475 = vadd.f32 %v2474, %v2199
        %v2476 = vadd.f32 %v2475, %v2200
        %v2477 = vadd.f32 %v2476, %v2201
        %v2478 = vadd.f32 %v2477, %v2202
        %v2479 = vadd.f32 %v2478, %v2203
        %v2480 = vadd.f32 %v2479, %v2204
        %v2481 = vadd.f32 %v2480, %v2205
        %v2482 = vadd.f32 %v2481, %v2206
        %v2483 = vadd.f32 %v2482, %v2207
        %v2484 = vadd.f32 %v2483, %v2208
        %v2485 = vadd.f32 %v2484, %v2209
        %v2486 = vadd.f32 %v2485, %v2210
        %v2487 = vadd.f32 %v2486, %v2211
        %v2488 = vadd.f32 %v2487, %v2212
        %v2489 = vadd.f32 %v2488, %v2213
        %v2490 = vadd.f32 %v2489, %v2214
        %v2491 = vadd.f32 %v2490, %v2215
        %v2492 = vadd.f32 %v2491, %v2216
        %v2493 = vrot.slane %v2492, 4
        %v2494 = vadd.f32 %v2492, %v2493
        %v2495 = vrot.slane %v2494, 2
        %v2496 = vadd.f32 %v2494, %v2495
        %v2497 = vrot.slane %v2496, 1
        %v2498 = vadd.f32 %v2496, %v2497
        %v2499 = vadd.f32 %v2217, %v2218
        %v2500 = vadd.f32 %v2499, %v2219
        %v2501 = vadd.f32 %v2500, %v2220
        %v2502 = vadd.f32 %v2501, %v2221
        %v2503 = vadd.f32 %v2502, %v2222
        %v2504 = vadd.f32 %v2503, %v2223
        %v2505 = vadd.f32 %v2504, %v2224
        %v2506 = vadd.f32 %v2505, %v2225
        %v2507 = vadd.f32 %v2506, %v2226
        %v2508 = vadd.f32 %v2507, %v2227
        %v2509 = vadd.f32 %v2508, %v2228
        %v2510 = vadd.f32 %v2509, %v2229
        %v2511 = vadd.f32 %v2510, %v2230
        %v2512 = vadd.f32 %v2511, %v2231
        %v2513 = vadd.f32 %v2512, %v2232
        %v2514 = vadd.f32 %v2513, %v2233
        %v2515 = vadd.f32 %v2514, %v2234
        %v2516 = vadd.f32 %v2515, %v2235
        %v2517 = vadd.f32 %v2516, %v2236
        %v2518 = vadd.f32 %v2517, %v2237
        %v2519 = vadd.f32 %v2518, %v2238
        %v2520 = vadd.f32 %v2519, %v2239
        %v2521 = vadd.f32 %v2520, %v2240
        %v2522 = vadd.f32 %v2521, %v2241
        %v2523 = vadd.f32 %v2522, %v2242
        %v2524 = vadd.f32 %v2523, %v2243
        %v2525 = vadd.f32 %v2524, %v2244
        %v2526 = vadd.f32 %v2525, %v2245
        %v2527 = vadd.f32 %v2526, %v2246
        %v2528 = vadd.f32 %v2527, %v2247
        %v2529 = vadd.f32 %v2528, %v2248
        %v2530 = vrot.slane %v2529, 4
        %v2531 = vadd.f32 %v2529, %v2530
        %v2532 = vrot.slane %v2531, 2
        %v2533 = vadd.f32 %v2531, %v2532
        %v2534 = vrot.slane %v2533, 1
        %v2535 = vadd.f32 %v2533, %v2534
        %v2536 = vadd.f32 %v2249, %v2250
        %v2537 = vadd.f32 %v2536, %v2251
        %v2538 = vadd.f32 %v2537, %v2252
        %v2539 = vadd.f32 %v2538, %v2253
        %v2540 = vadd.f32 %v2539, %v2254
        %v2541 = vadd.f32 %v2540, %v2255
        %v2542 = vadd.f32 %v2541, %v2256
        %v2543 = vadd.f32 %v2542, %v2257
        %v2544 = vadd.f32 %v2543, %v2258
        %v2545 = vadd.f32 %v2544, %v2259
        %v2546 = vadd.f32 %v2545, %v2260
        %v2547 = vadd.f32 %v2546, %v2261
        %v2548 = vadd.f32 %v2547, %v2262
        %v2549 = vadd.f32 %v2548, %v2263
        %v2550 = vadd.f32 %v2549, %v2264
        %v2551 = vadd.f32 %v2550, %v2265
        %v2552 = vadd.f32 %v2551, %v2266
        %v2553 = vadd.f32 %v2552, %v2267
        %v2554 = vadd.f32 %v2553, %v2268
        %v2555 = vadd.f32 %v2554, %v2269
        %v2556 = vadd.f32 %v2555, %v2270
        %v2557 = vadd.f32 %v2556, %v2271
        %v2558 = vadd.f32 %v2557, %v2272
        %v2559 = vadd.f32 %v2558, %v2273
        %v2560 = vadd.f32 %v2559, %v2274
        %v2561 = vadd.f32 %v2560, %v2275
        %v2562 = vadd.f32 %v2561, %v2276
        %v2563 = vadd.f32 %v2562, %v2277
        %v2564 = vadd.f32 %v2563, %v2278
        %v2565 = vadd.f32 %v2564, %v2279
        %v2566 = vadd.f32 %v2565, %v2280
        %v2567 = vrot.slane %v2566, 4
        %v2568 = vadd.f32 %v2566, %v2567
        %v2569 = vrot.slane %v2568, 2
        %v2570 = vadd.f32 %v2568, %v2569
        %v2571 = vrot.slane %v2570, 1
        %v2572 = vadd.f32 %v2570, %v2571
        %v2573 = vadd.f32 %v2281, %v2282
        %v2574 = vadd.f32 %v2573, %v2283
        %v2575 = vadd.f32 %v2574, %v2284
        %v2576 = vadd.f32 %v2575, %v2285
        %v2577 = vadd.f32 %v2576, %v2286
        %v2578 = vadd.f32 %v2577, %v2287
        %v2579 = vadd.f32 %v2578, %v2288
        %v2580 = vadd.f32 %v2579, %v2289
        %v2581 = vadd.f32 %v2580, %v2290
        %v2582 = vadd.f32 %v2581, %v2291
        %v2583 = vadd.f32 %v2582, %v2292
        %v2584 = vadd.f32 %v2583, %v2293
        %v2585 = vadd.f32 %v2584, %v2294
        %v2586 = vadd.f32 %v2585, %v2295
        %v2587 = vadd.f32 %v2586, %v2296
        %v2588 = vadd.f32 %v2587, %v2297
        %v2589 = vadd.f32 %v2588, %v2298
        %v2590 = vadd.f32 %v2589, %v2299
        %v2591 = vadd.f32 %v2590, %v2300
        %v2592 = vadd.f32 %v2591, %v2301
        %v2593 = vadd.f32 %v2592, %v2302
        %v2594 = vadd.f32 %v2593, %v2303
        %v2595 = vadd.f32 %v2594, %v2304
        %v2596 = vadd.f32 %v2595, %v2305
        %v2597 = vadd.f32 %v2596, %v2306
        %v2598 = vadd.f32 %v2597, %v2307
        %v2599 = vadd.f32 %v2598, %v2308
        %v2600 = vadd.f32 %v2599, %v2309
        %v2601 = vadd.f32 %v2600, %v2310
        %v2602 = vadd.f32 %v2601, %v2311
        %v2603 = vadd.f32 %v2602, %v2312
        %v2604 = vrot.slane %v2603, 4
        %v2605 = vadd.f32 %v2603, %v2604
        %v2606 = vrot.slane %v2605, 2
        %v2607 = vadd.f32 %v2605, %v2606
        %v2608 = vrot.slane %v2607, 1
        %v2609 = vadd.f32 %v2607, %v2608
        %vm2618 = vcmask 1041409
        %v2619 = vsel %vm2618, %v2387, %v2350
        %vm2620 = vcmask 1042434
        %v2621 = vsel %vm2620, %v2424, %v2619
        %vm2622 = vcmask 1043459
        %v2623 = vsel %vm2622, %v2461, %v2621
        %vm2624 = vcmask 1044484
        %v2625 = vsel %vm2624, %v2498, %v2623
        %vm2626 = vcmask 1045509
        %v2627 = vsel %vm2626, %v2535, %v2625
        %vm2628 = vcmask 1046534
        %v2629 = vsel %vm2628, %v2572, %v2627
        %vm2630 = vcmask 1047559
        %v2631 = vsel %vm2630, %v2609, %v2629
        %v2633 = vadd.f32 %v2313, %v2631
        %2634 = vst [vmem:[#allocation2] sm:$0xff] %v2633
        // Predicated region
        $region37: #{tpu_custom_call.1} parent=31 // pred_check
          %p2635 = pneg %p260
        $region38: #{tpu_custom_call.1} parent=31 // pred_check_branch
          %2637 = sbr.rel (%p2635) target = $region40
        $region39: #{tpu_custom_call.1} parent=31 // pred_region
          %v2638 = vld [vmem:[#allocation2] sm:$0xff]
          %v2639 = vld [vmem:[%s259] sm:$0xff]
          %2641 = vset.pattern.permute.xlu0 0
          %2642 = vperm.xlu0 %2641, %v2639
          %v2643 = vpop.permute.xlu0 %2642
          %v2645 = vrcp.pop %v2643
          %v2646 = vmul.f32 %v2638, %v2645
          %2647 = vst [vmem:[%s231] sm:$0xff] %v2646
        $region40: #{tpu_custom_call.1} parent=31 // pred_fallthru
          _
        %s2648 = sand.u32 %s119, 1
        %s2649 = scalar_lea.sflag [#allocation4], %s2648
        %s2650 = sand.u32 %s119, 1
        %s2651 = smul.addr %s2650, 8
        %s2652 = scalar_lea.vmem [#allocation3], %s2651
        // Predicated region
        $region41: #{tpu_custom_call.1} parent=31 // pred_check
          %p2653 = pneg %p129
        $region42: #{tpu_custom_call.1} parent=31 // pred_check_branch
          %2655 = sbr.rel (%p2653) target = $region44
        $region43: #{tpu_custom_call.1} parent=31 // pred_region
          %s2657 = ssub.s32 128, 128
          %2658 = vsyncadd %s2649, %s2657
          %s2659 = smul.addr %s21, 128
          %s2660 = scalar_lea.hbm %s3, %s2659
          %s2662 = sshll.u32 %s2652, 4
          %s2663 = int_to_ptr.vmem [resolvable:$true] %s2662
          %2665 = dma.vmem_to_hbm [thread:$0]  %s2663, 128, %s2660, %s2649
        $region44: #{tpu_custom_call.1} parent=31 // pred_fallthru
          _
      $region32: #{tpu_custom_call.1} parent=5 // pred_fallthru
        _
      %p2666 = scmp.le.s32.totalorder 2, %s12
      // Predicated region
      $region45: #{tpu_custom_call.1} parent=5 // pred_check
        %p2667 = pneg %p2666
      $region46: #{tpu_custom_call.1} parent=5 // pred_check_branch
        %2669 = sbr.rel (%p2667) target = $region48
      $region47: #{tpu_custom_call.1} parent=5 // pred_region
        %s2670 = ssub.s32 %s12, 2
        // Predicated region
        $region49: #{tpu_custom_call.1} parent=47 // pred_check
          %p2671 = pneg %p135
        $region50: #{tpu_custom_call.1} parent=47 // pred_check_branch
          %2673 = sbr.rel (%p2671) target = $region52
        $region51: #{tpu_custom_call.1} parent=47 // pred_region
          %s2674 = sand.u32 %s120, 1
          %s2675 = scalar_lea.sflag [#allocation4], %s2674
          %s2676 = sand.u32 %s120, 1
          %s2677 = smul.addr %s2676, 8
          %s2678 = scalar_lea.vmem [#allocation3], %s2677
          %2679 = dma.done %s2675, 128
        $region52: #{tpu_custom_call.1} parent=47 // pred_fallthru
          _
      $region48: #{tpu_custom_call.1} parent=5 // pred_fallthru
        _
    $region6: #{tpu_custom_call.1} parent=1 // loop_footer
      %s16 = sadd.s32 1, %s12
    $region7: #{tpu_custom_call.1} parent=1 // loop_footer_branch
      %11 = sbr.rel target = $region3
    $region8: #{tpu_custom_call.1} parent=1 // loop_exit
      _
    %2680 = vsyncpa [#allocation4], 1
    %s2681 = scalar_lea.sflag [#allocation4], 1
    %2682 = vsyncpa %s2681, 1

</llo_original>
